<compile_context>
chip_gen: v6e
topology: v6e:2x2x1
jax: 0.10.0
libtpu: 0.0.40
codegen_flags: <defaults>
</compile_context>

<pallas_src>
import functools

import numpy as np
import jax
import jax.numpy as jnp
from jax.experimental import pallas as pl
from jax.experimental.pallas import tpu as pltpu

LN_EPS = 1e-5
VMEM_LIMIT = 64 * 1024 * 1024


def _round_up(x, m):
    return (x + m - 1) // m * m


def _pick_tile(n, cap, align):
    """Largest row tile <= cap (multiple of `align`); prefer >= 2 grid steps so
    both v7x TensorCores get work on the 'parallel' axis when the array allows."""
    n_pad = _round_up(max(n, 1), align)
    n_tiles = max(2, -(-n_pad // cap))
    tile = _round_up(-(-n_pad // n_tiles), align)
    return min(tile, n_pad)


# ----------------------------- Pallas kernels ------------------------------ #

def _mlp_ln_tail(x, w2, b2, w3, b3, gamma, beta):
    """Shared tail: relu -> linear -> relu -> linear -> layernorm (f32 stats)."""
    x = jnp.maximum(x, 0.0)
    x = jnp.dot(x.astype(jnp.bfloat16), w2, preferred_element_type=jnp.float32) + b2
    x = jnp.maximum(x, 0.0)
    x = jnp.dot(x.astype(jnp.bfloat16), w3, preferred_element_type=jnp.float32) + b3
    mean = jnp.mean(x, axis=-1, keepdims=True)
    var = jnp.mean((x - mean) ** 2, axis=-1, keepdims=True)
    return (x - mean) * jax.lax.rsqrt(var + LN_EPS) * gamma + beta


def _edge_update_kernel(e_ref, r_ref, s_ref,
                        w1_ref, b1_ref, w2_ref, b2_ref, w3_ref, b3_ref,
                        gamma_ref, beta_ref,
                        eo_ref, enew_ref):
    """One row-tile of edges: fused 3-layer MLP + LN.
    First matmul on the K-concatenated [edges|receivers|senders] (tile_e, 384)
    bf16 operand (fills the 256-deep MXU on v6e/v7x).  Emits:
      eo   (bf16) = LN output, consumed by the node-kernel scatter;
      enew (f32)  = residual stream edges + LN output."""
    e = e_ref[...]                                                # f32 residual
    x = jnp.concatenate([e.astype(jnp.bfloat16), r_ref[...], s_ref[...]], axis=-1)
    x = jnp.dot(x, w1_ref[...], preferred_element_type=jnp.float32) + b1_ref[...]
    y = _mlp_ln_tail(x, w2_ref[...], b2_ref[...], w3_ref[...], b3_ref[...],
                     gamma_ref[...], beta_ref[...])
    eo_ref[...] = y.astype(eo_ref.dtype)
    enew_ref[...] = e + y


def _node_update_kernel(recv_ref, eo_ref, n_ref,
                        w1_ref, b1_ref, w2_ref, b2_ref, w3_ref, b3_ref,
                        gamma_ref, beta_ref,
                        out_ref, agg_ref, *, chunk):
    """Grid = (node row tiles,) only.  edges_out (bf16) and the receiver index
    row stay resident in VMEM (const index_map -> fetched once); the scatter-add
    is a pl.loop over edge chunks of one-hot matmuls accumulated into a f32
    VMEM scratch.  Node MLP + LN + residual follows."""
    tile_bn = n_ref.shape[0]
    n_chunks = eo_ref.shape[0] // chunk
    base = pl.program_id(0) * tile_bn
    iota_col = jax.lax.broadcasted_iota(jnp.int32, (tile_bn, 1), 0)
    agg_ref[...] = jnp.zeros_like(agg_ref)

    @pl.loop(0, n_chunks)
    def _(c):
        off = pl.multiple_of(c * chunk, chunk)
        # recv carries -1 on padded edge rows -> never matches -> contributes 0.
        local = recv_ref[:, pl.ds(off, chunk)] - base             # (1, chunk) i32
        onehot = (local == iota_col).astype(jnp.bfloat16)         # (tile_bn, chunk)
        agg_ref[...] += jnp.dot(onehot, eo_ref[pl.ds(off, chunk), :],
                                preferred_element_type=jnp.float32)

    n = n_ref[...]                                                # f32 residual
    # First linear on the K-concatenated [aggregated_edges | nodes] operand.
    x = jnp.concatenate([agg_ref[...].astype(jnp.bfloat16),
                         n.astype(jnp.bfloat16)], axis=-1)
    x = jnp.dot(x, w1_ref[...], preferred_element_type=jnp.float32) + b1_ref[...]
    y = _mlp_ln_tail(x, w2_ref[...], b2_ref[...], w3_ref[...], b3_ref[...],
                     gamma_ref[...], beta_ref[...])
    out_ref[...] = n + y


# ------------------------------ pallas_call wrappers ------------------------ #

def edge_update_call(edges_p, recv_bf, send_bf, kp, *, tile_e):
    Ep, De = edges_p.shape
    Dn = recv_bf.shape[1]
    grid = (Ep // tile_e,)
    row = lambda i: (i, 0)
    const = lambda i: (0, 0)
    in_specs = [
        pl.BlockSpec((tile_e, De), row),          # edges (f32 residual stream)
        pl.BlockSpec((tile_e, Dn), row),          # receivers (bf16)
        pl.BlockSpec((tile_e, Dn), row),          # senders   (bf16)
        pl.BlockSpec(kp["w1"].shape, const),
        pl.BlockSpec(kp["b1"].shape, const),
        pl.BlockSpec(kp["w2"].shape, const),
        pl.BlockSpec(kp["b2"].shape, const),
        pl.BlockSpec(kp["w3"].shape, const),
        pl.BlockSpec(kp["b3"].shape, const),
        pl.BlockSpec(kp["gamma"].shape, const),
        pl.BlockSpec(kp["beta"].shape, const),
    ]
    out_specs = (pl.BlockSpec((tile_e, De), row),
                 pl.BlockSpec((tile_e, De), row))
    out_shape = (jax.ShapeDtypeStruct((Ep, De), jnp.bfloat16),    # LN output
                 jax.ShapeDtypeStruct((Ep, De), jnp.float32))     # residual
    return pl.pallas_call(
        _edge_update_kernel,
        grid=grid,
        in_specs=in_specs,
        out_specs=out_specs,
        out_shape=out_shape,
        input_output_aliases={0: 1},              # edges_p -> enew (in place)
        compiler_params=pltpu.CompilerParams(
            dimension_semantics=("parallel",),
            vmem_limit_bytes=VMEM_LIMIT),
    )(edges_p, recv_bf, send_bf,
      kp["w1"], kp["b1"], kp["w2"], kp["b2"], kp["w3"], kp["b3"],
      kp["gamma"], kp["beta"])


def node_update_call(recv_row, edges_out_bf, nodes_flat_p, kp, *, tile_bn, chunk):
    BNp, Dn = nodes_flat_p.shape
    Ep, De = edges_out_bf.shape
    grid = (BNp // tile_bn,)
    const = lambda i: (0, 0)
    in_specs = [
        pl.BlockSpec((1, Ep), const),             # receiver indices, resident
        pl.BlockSpec((Ep, De), const),            # edges_out bf16, fetched once
        pl.BlockSpec((tile_bn, Dn), lambda i: (i, 0)),
        pl.BlockSpec(kp["w1"].shape, const),
        pl.BlockSpec(kp["b1"].shape, const),
        pl.BlockSpec(kp["w2"].shape, const),
        pl.BlockSpec(kp["b2"].shape, const),
        pl.BlockSpec(kp["w3"].shape, const),
        pl.BlockSpec(kp["b3"].shape, const),
        pl.BlockSpec(kp["gamma"].shape, const),
        pl.BlockSpec(kp["beta"].shape, const),
    ]
    out_specs = pl.BlockSpec((tile_bn, Dn), lambda i: (i, 0))
    return pl.pallas_call(
        functools.partial(_node_update_kernel, chunk=chunk),
        grid=grid,
        in_specs=in_specs,
        out_specs=out_specs,
        out_shape=jax.ShapeDtypeStruct((BNp, Dn), jnp.float32),
        scratch_shapes=[pltpu.VMEM((tile_bn, De), jnp.float32)],
        input_output_aliases={2: 0},              # nodes_flat_p -> out (in place)
        compiler_params=pltpu.CompilerParams(
            dimension_semantics=("parallel",),
            vmem_limit_bytes=VMEM_LIMIT),
    )(recv_row, edges_out_bf, nodes_flat_p,
      kp["w1"], kp["b1"], kp["w2"], kp["b2"], kp["w3"], kp["b3"],
      kp["gamma"], kp["beta"])


# ----------------------------- parameter init ------------------------------ #

def _init_linear(key, d_in, d_out):
    kw, kb = jax.random.split(key)
    bound = 1.0 / np.sqrt(d_in)
    w = jax.random.uniform(kw, (d_in, d_out), jnp.float32, -bound, bound)
    b = jax.random.uniform(kb, (1, d_out), jnp.float32, -bound, bound)
    return w, b


def init_processor_params(key, n_layers, node_dim, edge_dim, hidden_dim):
    params = []
    for _ in range(n_layers):
        keys = jax.random.split(key, 7)
        key = keys[0]
        ew1, eb1 = _init_linear(keys[1], edge_dim + 2 * node_dim, hidden_dim)
        ew2, eb2 = _init_linear(keys[2], hidden_dim, hidden_dim)
        ew3, eb3 = _init_linear(keys[3], hidden_dim, edge_dim)
        edge_p = {"w1": ew1, "b1": eb1, "w2": ew2, "b2": eb2, "w3": ew3, "b3": eb3,
                  "gamma": jnp.ones((1, edge_dim), jnp.float32),
                  "beta": jnp.zeros((1, edge_dim), jnp.float32)}
        nw1, nb1 = _init_linear(keys[4], edge_dim + node_dim, hidden_dim)
        nw2, nb2 = _init_linear(keys[5], hidden_dim, hidden_dim)
        nw3, nb3 = _init_linear(keys[6], hidden_dim, node_dim)
        node_p = {"w1": nw1, "b1": nb1, "w2": nw2, "b2": nb2, "w3": nw3, "b3": nb3,
                  "gamma": jnp.ones((1, node_dim), jnp.float32),
                  "beta": jnp.zeros((1, node_dim), jnp.float32)}
        params.append({"edge": edge_p, "node": node_p})
    return params


def to_kernel_params(params):
    """bf16 copies of the matmul weights (DMA + MXU throughput); biases and LN
    params stay f32.  Intentional: bf16 matmuls with f32 accumulation."""
    def cast(p):
        mm = ("w1", "w2", "w3")
        return {k: (v.astype(jnp.bfloat16) if k in mm else v) for k, v in p.items()}
    return [{"edge": cast(l["edge"]), "node": cast(l["node"])} for l in params]


# ----------------------------- processor forward --------------------------- #

def processor_forward(kparams, nodes, edges, neighbor_idxs):
    B, N, Dn = nodes.shape
    E, De = edges.shape
    BN = B * N
    assert Dn % 128 == 0 and De % 128 == 0, "feature dims must be lane-aligned"

    # Edge tile lane-aligned (multiple of 128), node tile sublane-aligned (8).
    tile_e = _pick_tile(E, 2048, 128)
    Ep = _round_up(E, tile_e)
    tile_bn = _pick_tile(BN, 256, 8)
    BNp = _round_up(BN, tile_bn)

    b_idx = neighbor_idxs[:, 0]
    r_idx = neighbor_idxs[:, 1]
    s_idx = neighbor_idxs[:, 2]
    flat_recv = (b_idx * N + r_idx).astype(jnp.int32)
    flat_send = (b_idx * N + s_idx).astype(jnp.int32)

    # Gather indices for padded edge rows -> node 0 (their outputs are discarded).
    recv_gather = jnp.pad(flat_recv, (0, Ep - E))
    send_gather = jnp.pad(flat_send, (0, Ep - E))
    # Scatter indices for padded edge rows -> -1 (never matches -> contribute 0).
    recv_scatter = jnp.pad(flat_recv, (0, Ep - E),
                           constant_values=-1).reshape(1, Ep)

    edges_p = jnp.pad(edges, ((0, Ep - E), (0, 0)))
    nodes_p = jnp.pad(nodes.reshape(BN, Dn), ((0, BNp - BN), (0, 0)))

    for kp in kparams:
        # bf16 gather glue: halves the streamed receiver/sender bytes.
        nodes_bf = nodes_p.astype(jnp.bfloat16)
        receivers = jnp.take(nodes_bf, recv_gather, axis=0)       # (Ep, Dn) bf16
        senders = jnp.take(nodes_bf, send_gather, axis=0)         # (Ep, Dn) bf16
        edges_out_bf, edges_p = edge_update_call(
            edges_p, receivers, senders, kp["edge"], tile_e=tile_e)
        nodes_p = node_update_call(
            recv_scatter, edges_out_bf, nodes_p, kp["node"],
            tile_bn=tile_bn, chunk=tile_e)

    nodes_new = nodes_p[:BN].reshape(B, N, Dn)
    edges_new = edges_p[:E]
    return nodes_new, edges_new, neighbor_idxs


# ----------------------------- pure-JAX reference --------------------------- #

def _mlp_ref(x, w1, b1, w2, b2, w3, b3):
    x = jnp.maximum(x @ w1 + b1, 0.0)
    x = jnp.maximum(x @ w2 + b2, 0.0)
    return x @ w3 + b3


def _ln_ref(x, gamma, beta):
    mean = jnp.mean(x, axis=-1, keepdims=True)
    var = jnp.mean((x - mean) ** 2, axis=-1, keepdims=True)
    return (x - mean) / jnp.sqrt(var + LN_EPS) * gamma + beta


def processor_ref(params, nodes, edges, neighbor_idxs):
    B, N, Dn = nodes.shape
    b_idx, r_idx, s_idx = neighbor_idxs[:, 0], neighbor_idxs[:, 1], neighbor_idxs[:, 2]
    flat_recv = b_idx * N + r_idx
    for layer in params:
        ep, np_ = layer["edge"], layer["node"]
        receivers = nodes[b_idx, r_idx]
        senders = nodes[b_idx, s_idx]
        e_in = jnp.concatenate([edges, receivers, senders], axis=-1)
        edges_out = _ln_ref(_mlp_ref(e_in, ep["w1"], ep["b1"], ep["w2"], ep["b2"],
                                     ep["w3"], ep["b3"]), ep["gamma"], ep["beta"])
        agg = jax.ops.segment_sum(edges_out, flat_recv, num_segments=B * N)
        n_in = jnp.concatenate([agg, nodes.reshape(B * N, Dn)], axis=-1)
        nodes_out = _ln_ref(_mlp_ref(n_in, np_["w1"], np_["b1"], np_["w2"], np_["b2"],
                                     np_["w3"], np_["b3"]), np_["gamma"], np_["beta"])
        edges = edges + edges_out
        nodes = nodes + nodes_out.reshape(B, N, Dn)
    return nodes, edges, neighbor_idxs


# ------------------------------------ main ---------------------------------- #

if __name__ == "__main__":
    B, N, E = 2, 8, 32                    # batch, nodes per graph, edges
    NODE_DIM = EDGE_DIM = HIDDEN = 128    # module defaults; lane-dense on TPU
    N_LAYERS = 2

    key = jax.random.PRNGKey(0)
    k_nodes, k_edges, k_b, k_r, k_s, k_params = jax.random.split(key, 6)

    nodes = jax.random.normal(k_nodes, (B, N, NODE_DIM), jnp.float32)
    edges = jax.random.normal(k_edges, (E, EDGE_DIM), jnp.float32)
    neighbor_idxs = jnp.stack([
        jax.random.randint(k_b, (E,), 0, B),
        jax.random.randint(k_r, (E,), 0, N),
        jax.random.randint(k_s, (E,), 0, N),
    ], axis=-1).astype(jnp.int32)                                  # (E, 3)

    params = init_processor_params(k_params, N_LAYERS, NODE_DIM, EDGE_DIM, HIDDEN)
    kparams = to_kernel_params(params)

    nodes_out, edges_out, idx_out = jax.block_until_ready(
        jax.jit(processor_forward)(kparams, nodes, edges, neighbor_idxs))

    nodes_ref, edges_ref, _ = jax.block_until_ready(
        jax.jit(processor_ref)(params, nodes, edges, neighbor_idxs))

    # bf16 matmul operands / bf16 edges_out stream with f32 accumulation:
    # intentional divergence from the f32 reference -> relaxed tolerance.
    np.testing.assert_allclose(np.asarray(nodes_out), np.asarray(nodes_ref),
                               rtol=5e-2, atol=5e-2)
    np.testing.assert_allclose(np.asarray(edges_out), np.asarray(edges_ref),
                               rtol=5e-2, atol=5e-2)
    print("KERNEL_OK")
</pallas_src>

<mosaic_0001>
module attributes {stable_mosaic.version = 11 : i64} {
  func.func @_edge_update_kernel(%arg0: i32, %arg1: memref<128x128xf32, #tpu.memory_space<vmem>>, %arg2: memref<128x128xbf16, #tpu.memory_space<vmem>>, %arg3: memref<128x128xbf16, #tpu.memory_space<vmem>>, %arg4: memref<384x128xbf16, #tpu.memory_space<vmem>>, %arg5: memref<1x128xf32, #tpu.memory_space<vmem>>, %arg6: memref<128x128xbf16, #tpu.memory_space<vmem>>, %arg7: memref<1x128xf32, #tpu.memory_space<vmem>>, %arg8: memref<128x128xbf16, #tpu.memory_space<vmem>>, %arg9: memref<1x128xf32, #tpu.memory_space<vmem>>, %arg10: memref<1x128xf32, #tpu.memory_space<vmem>>, %arg11: memref<1x128xf32, #tpu.memory_space<vmem>>, %arg12: memref<128x128xbf16, #tpu.memory_space<vmem>>, %arg13: memref<128x128xf32, #tpu.memory_space<vmem>>) attributes {dimension_semantics = [#tpu.dimension_semantics<parallel>], iteration_bounds = array<i64: 1>, scalar_prefetch = 0 : i64, scratch_operands = 0 : i64, tpu.core_type = #tpu.core_type<tc>, window_params = [{transform_indices = @transform_0, window_bounds = array<i64: 128, 128>}, {transform_indices = @transform_1, window_bounds = array<i64: 128, 128>}, {transform_indices = @transform_2, window_bounds = array<i64: 128, 128>}, {pipeline_mode = #tpu.pipeline_mode<synchronous>, transform_indices = @transform_3, window_bounds = array<i64: 384, 128>}, {pipeline_mode = #tpu.pipeline_mode<synchronous>, transform_indices = @transform_4, window_bounds = array<i64: 1, 128>}, {pipeline_mode = #tpu.pipeline_mode<synchronous>, transform_indices = @transform_5, window_bounds = array<i64: 128, 128>}, {pipeline_mode = #tpu.pipeline_mode<synchronous>, transform_indices = @transform_6, window_bounds = array<i64: 1, 128>}, {pipeline_mode = #tpu.pipeline_mode<synchronous>, transform_indices = @transform_7, window_bounds = array<i64: 128, 128>}, {pipeline_mode = #tpu.pipeline_mode<synchronous>, transform_indices = @transform_8, window_bounds = array<i64: 1, 128>}, {pipeline_mode = #tpu.pipeline_mode<synchronous>, transform_indices = @transform_9, window_bounds = array<i64: 1, 128>}, {pipeline_mode = #tpu.pipeline_mode<synchronous>, transform_indices = @transform_10, window_bounds = array<i64: 1, 128>}, {transform_indices = @transform_11, window_bounds = array<i64: 128, 128>}, {transform_indices = @transform_12, window_bounds = array<i64: 128, 128>}]} {
    %c0 = arith.constant 0 : index
    %c0_0 = arith.constant 0 : index
    %0 = vector.load %arg1[%c0, %c0_0] : memref<128x128xf32, #tpu.memory_space<vmem>>, vector<128x128xf32>
    %1 = arith.truncf %0 : vector<128x128xf32> to vector<128x128xbf16>
    %c0_1 = arith.constant 0 : index
    %c0_2 = arith.constant 0 : index
    %2 = vector.load %arg2[%c0_1, %c0_2] : memref<128x128xbf16, #tpu.memory_space<vmem>>, vector<128x128xbf16>
    %c0_3 = arith.constant 0 : index
    %c0_4 = arith.constant 0 : index
    %3 = vector.load %arg3[%c0_3, %c0_4] : memref<128x128xbf16, #tpu.memory_space<vmem>>, vector<128x128xbf16>
    %4 = tpu.concatenate %1, %2, %3 in 1 : vector<128x128xbf16>, vector<128x128xbf16>, vector<128x128xbf16> -> vector<128x384xbf16>
    %c0_5 = arith.constant 0 : index
    %c0_6 = arith.constant 0 : index
    %5 = vector.load %arg4[%c0_5, %c0_6] : memref<384x128xbf16, #tpu.memory_space<vmem>>, vector<384x128xbf16>
    %cst = arith.constant dense<0.000000e+00> : vector<128x128xf32>
    %6 = tpu.matmul %4, %5, %cst {dimension_numbers = #tpu.dot_dimension_numbers<[1], [0], [0], [1], [0, 0, 1, 1], [], []>} : vector<128x384xbf16>, vector<384x128xbf16>, vector<128x128xf32> -> vector<128x128xf32>
    %c0_7 = arith.constant 0 : index
    %c0_8 = arith.constant 0 : index
    %7 = vector.load %arg5[%c0_7, %c0_8] : memref<1x128xf32, #tpu.memory_space<vmem>>, vector<1x128xf32>
    %8 = vector.broadcast %7 : vector<1x128xf32> to vector<128x128xf32>
    %9 = arith.addf %6, %8 : vector<128x128xf32>
    %c0_9 = arith.constant 0 : index
    %c0_10 = arith.constant 0 : index
    %10 = vector.load %arg6[%c0_9, %c0_10] : memref<128x128xbf16, #tpu.memory_space<vmem>>, vector<128x128xbf16>
    %c0_11 = arith.constant 0 : index
    %c0_12 = arith.constant 0 : index
    %11 = vector.load %arg7[%c0_11, %c0_12] : memref<1x128xf32, #tpu.memory_space<vmem>>, vector<1x128xf32>
    %c0_13 = arith.constant 0 : index
    %c0_14 = arith.constant 0 : index
    %12 = vector.load %arg8[%c0_13, %c0_14] : memref<128x128xbf16, #tpu.memory_space<vmem>>, vector<128x128xbf16>
    %c0_15 = arith.constant 0 : index
    %c0_16 = arith.constant 0 : index
    %13 = vector.load %arg9[%c0_15, %c0_16] : memref<1x128xf32, #tpu.memory_space<vmem>>, vector<1x128xf32>
    %c0_17 = arith.constant 0 : index
    %c0_18 = arith.constant 0 : index
    %14 = vector.load %arg10[%c0_17, %c0_18] : memref<1x128xf32, #tpu.memory_space<vmem>>, vector<1x128xf32>
    %c0_19 = arith.constant 0 : index
    %c0_20 = arith.constant 0 : index
    %15 = vector.load %arg11[%c0_19, %c0_20] : memref<1x128xf32, #tpu.memory_space<vmem>>, vector<1x128xf32>
    %cst_21 = arith.constant 0.000000e+00 : f32
    %16 = vector.broadcast %cst_21 : f32 to vector<128x128xf32>
    %17 = arith.maximumf %9, %16 : vector<128x128xf32>
    %18 = arith.truncf %17 : vector<128x128xf32> to vector<128x128xbf16>
    %cst_22 = arith.constant dense<0.000000e+00> : vector<128x128xf32>
    %19 = tpu.matmul %18, %10, %cst_22 {dimension_numbers = #tpu.dot_dimension_numbers<[1], [0], [0], [1], [0, 0, 1, 1], [], []>} : vector<128x128xbf16>, vector<128x128xbf16>, vector<128x128xf32> -> vector<128x128xf32>
    %20 = vector.broadcast %11 : vector<1x128xf32> to vector<128x128xf32>
    %21 = arith.addf %19, %20 : vector<128x128xf32>
    %cst_23 = arith.constant 0.000000e+00 : f32
    %22 = vector.broadcast %cst_23 : f32 to vector<128x128xf32>
    %23 = arith.maximumf %21, %22 : vector<128x128xf32>
    %24 = arith.truncf %23 : vector<128x128xf32> to vector<128x128xbf16>
    %cst_24 = arith.constant dense<0.000000e+00> : vector<128x128xf32>
    %25 = tpu.matmul %24, %12, %cst_24 {dimension_numbers = #tpu.dot_dimension_numbers<[1], [0], [0], [1], [0, 0, 1, 1], [], []>} : vector<128x128xbf16>, vector<128x128xbf16>, vector<128x128xf32> -> vector<128x128xf32>
    %26 = vector.broadcast %13 : vector<1x128xf32> to vector<128x128xf32>
    %27 = arith.addf %25, %26 : vector<128x128xf32>
    %cst_25 = arith.constant dense<0.000000e+00> : vector<128xf32>
    %28 = vector.multi_reduction <add>, %27, %cst_25 [1] : vector<128x128xf32> to vector<128xf32>
    %29 = vector.shape_cast %28 : vector<128xf32> to vector<128x1xf32>
    %cst_26 = arith.constant 1.280000e+02 : f32
    %30 = vector.broadcast %cst_26 : f32 to vector<128x1xf32>
    %31 = arith.divf %29, %30 : vector<128x1xf32>
    %32 = vector.broadcast %31 : vector<128x1xf32> to vector<128x128xf32>
    %33 = arith.subf %27, %32 : vector<128x128xf32>
    %34 = arith.mulf %33, %33 : vector<128x128xf32>
    %cst_27 = arith.constant dense<0.000000e+00> : vector<128xf32>
    %35 = vector.multi_reduction <add>, %34, %cst_27 [1] : vector<128x128xf32> to vector<128xf32>
    %36 = vector.shape_cast %35 : vector<128xf32> to vector<128x1xf32>
    %cst_28 = arith.constant 1.280000e+02 : f32
    %37 = vector.broadcast %cst_28 : f32 to vector<128x1xf32>
    %38 = arith.divf %36, %37 : vector<128x1xf32>
    %39 = vector.broadcast %31 : vector<128x1xf32> to vector<128x128xf32>
    %40 = arith.subf %27, %39 : vector<128x128xf32>
    %cst_29 = arith.constant 9.99999974E-6 : f32
    %41 = vector.broadcast %cst_29 : f32 to vector<128x1xf32>
    %42 = arith.addf %38, %41 : vector<128x1xf32>
    %43 = math.rsqrt %42 : vector<128x1xf32>
    %44 = vector.broadcast %43 : vector<128x1xf32> to vector<128x128xf32>
    %45 = arith.mulf %40, %44 : vector<128x128xf32>
    %46 = vector.broadcast %14 : vector<1x128xf32> to vector<128x128xf32>
    %47 = arith.mulf %45, %46 : vector<128x128xf32>
    %48 = vector.broadcast %15 : vector<1x128xf32> to vector<128x128xf32>
    %49 = arith.addf %47, %48 : vector<128x128xf32>
    %50 = arith.truncf %49 : vector<128x128xf32> to vector<128x128xbf16>
    %c0_30 = arith.constant 0 : index
    %c0_31 = arith.constant 0 : index
    %51 = vector.load %arg12[%c0_30, %c0_31] : memref<128x128xbf16, #tpu.memory_space<vmem>>, vector<128x128xbf16>
    tpu.vector_store %arg12[%c0_30, %c0_31], %50 {strides = array<i32>} : memref<128x128xbf16, #tpu.memory_space<vmem>>, vector<128x128xbf16>,
    %52 = arith.addf %0, %49 : vector<128x128xf32>
    %c0_32 = arith.constant 0 : index
    %c0_33 = arith.constant 0 : index
    %53 = vector.load %arg13[%c0_32, %c0_33] : memref<128x128xf32, #tpu.memory_space<vmem>>, vector<128x128xf32>
    tpu.vector_store %arg13[%c0_32, %c0_33], %52 {strides = array<i32>} : memref<128x128xf32, #tpu.memory_space<vmem>>, vector<128x128xf32>,
    return
  }
  func.func @transform_0(%arg0: i32) -> (i32, i32) {
    %c0_i32 = arith.constant 0 : i32
    %c0_i32_0 = arith.constant 0 : i32
    return %arg0, %c0_i32 : i32, i32
  }
  func.func @transform_1(%arg0: i32) -> (i32, i32) {
    %c0_i32 = arith.constant 0 : i32
    %c0_i32_0 = arith.constant 0 : i32
    return %arg0, %c0_i32 : i32, i32
  }
  func.func @transform_2(%arg0: i32) -> (i32, i32) {
    %c0_i32 = arith.constant 0 : i32
    %c0_i32_0 = arith.constant 0 : i32
    return %arg0, %c0_i32 : i32, i32
  }
  func.func @transform_3(%arg0: i32) -> (i32, i32) {
    %c0_i32 = arith.constant 0 : i32
    %c0_i32_0 = arith.constant 0 : i32
    %c0_i32_1 = arith.constant 0 : i32
    return %c0_i32, %c0_i32_0 : i32, i32
  }
  func.func @transform_4(%arg0: i32) -> (i32, i32) {
    %c0_i32 = arith.constant 0 : i32
    %c0_i32_0 = arith.constant 0 : i32
    %c0_i32_1 = arith.constant 0 : i32
    return %c0_i32, %c0_i32_0 : i32, i32
  }
  func.func @transform_5(%arg0: i32) -> (i32, i32) {
    %c0_i32 = arith.constant 0 : i32
    %c0_i32_0 = arith.constant 0 : i32
    %c0_i32_1 = arith.constant 0 : i32
    return %c0_i32, %c0_i32_0 : i32, i32
  }
  func.func @transform_6(%arg0: i32) -> (i32, i32) {
    %c0_i32 = arith.constant 0 : i32
    %c0_i32_0 = arith.constant 0 : i32
    %c0_i32_1 = arith.constant 0 : i32
    return %c0_i32, %c0_i32_0 : i32, i32
  }
  func.func @transform_7(%arg0: i32) -> (i32, i32) {
    %c0_i32 = arith.constant 0 : i32
    %c0_i32_0 = arith.constant 0 : i32
    %c0_i32_1 = arith.constant 0 : i32
    return %c0_i32, %c0_i32_0 : i32, i32
  }
  func.func @transform_8(%arg0: i32) -> (i32, i32) {
    %c0_i32 = arith.constant 0 : i32
    %c0_i32_0 = arith.constant 0 : i32
    %c0_i32_1 = arith.constant 0 : i32
    return %c0_i32, %c0_i32_0 : i32, i32
  }
  func.func @transform_9(%arg0: i32) -> (i32, i32) {
    %c0_i32 = arith.constant 0 : i32
    %c0_i32_0 = arith.constant 0 : i32
    %c0_i32_1 = arith.constant 0 : i32
    return %c0_i32, %c0_i32_0 : i32, i32
  }
  func.func @transform_10(%arg0: i32) -> (i32, i32) {
    %c0_i32 = arith.constant 0 : i32
    %c0_i32_0 = arith.constant 0 : i32
    %c0_i32_1 = arith.constant 0 : i32
    return %c0_i32, %c0_i32_0 : i32, i32
  }
  func.func @transform_11(%arg0: i32) -> (i32, i32) {
    %c0_i32 = arith.constant 0 : i32
    %c0_i32_0 = arith.constant 0 : i32
    return %arg0, %c0_i32 : i32, i32
  }
  func.func @transform_12(%arg0: i32) -> (i32, i32) {
    %c0_i32 = arith.constant 0 : i32
    %c0_i32_0 = arith.constant 0 : i32
    return %arg0, %c0_i32 : i32, i32
  }
}

module attributes {stable_mosaic.version = 11 : i64} {
  func.func @_node_update_kernel(%arg0: i32, %arg1: memref<1x128xi32, #tpu.memory_space<vmem>>, %arg2: memref<128x128xbf16, #tpu.memory_space<vmem>>, %arg3: memref<8x128xf32, #tpu.memory_space<vmem>>, %arg4: memref<256x128xbf16, #tpu.memory_space<vmem>>, %arg5: memref<1x128xf32, #tpu.memory_space<vmem>>, %arg6: memref<128x128xbf16, #tpu.memory_space<vmem>>, %arg7: memref<1x128xf32, #tpu.memory_space<vmem>>, %arg8: memref<128x128xbf16, #tpu.memory_space<vmem>>, %arg9: memref<1x128xf32, #tpu.memory_space<vmem>>, %arg10: memref<1x128xf32, #tpu.memory_space<vmem>>, %arg11: memref<1x128xf32, #tpu.memory_space<vmem>>, %arg12: memref<8x128xf32, #tpu.memory_space<vmem>>, %arg13: memref<8x128xf32, #tpu.memory_space<vmem>>) attributes {dimension_semantics = [#tpu.dimension_semantics<parallel>], iteration_bounds = array<i64: 2>, scalar_prefetch = 0 : i64, scratch_operands = 1 : i64, tpu.core_type = #tpu.core_type<tc>, window_params = [{pipeline_mode = #tpu.pipeline_mode<synchronous>, transform_indices = @transform_0, window_bounds = array<i64: 1, 128>}, {pipeline_mode = #tpu.pipeline_mode<synchronous>, transform_indices = @transform_1, window_bounds = array<i64: 128, 128>}, {transform_indices = @transform_2, window_bounds = array<i64: 8, 128>}, {pipeline_mode = #tpu.pipeline_mode<synchronous>, transform_indices = @transform_3, window_bounds = array<i64: 256, 128>}, {pipeline_mode = #tpu.pipeline_mode<synchronous>, transform_indices = @transform_4, window_bounds = array<i64: 1, 128>}, {pipeline_mode = #tpu.pipeline_mode<synchronous>, transform_indices = @transform_5, window_bounds = array<i64: 128, 128>}, {pipeline_mode = #tpu.pipeline_mode<synchronous>, transform_indices = @transform_6, window_bounds = array<i64: 1, 128>}, {pipeline_mode = #tpu.pipeline_mode<synchronous>, transform_indices = @transform_7, window_bounds = array<i64: 128, 128>}, {pipeline_mode = #tpu.pipeline_mode<synchronous>, transform_indices = @transform_8, window_bounds = array<i64: 1, 128>}, {pipeline_mode = #tpu.pipeline_mode<synchronous>, transform_indices = @transform_9, window_bounds = array<i64: 1, 128>}, {pipeline_mode = #tpu.pipeline_mode<synchronous>, transform_indices = @transform_10, window_bounds = array<i64: 1, 128>}, {transform_indices = @transform_11, window_bounds = array<i64: 8, 128>}]} {
    %c8_i32 = arith.constant 8 : i32
    %0 = arith.muli %arg0, %c8_i32 : i32
    %1 = tpu.iota {dimensions = array<i32: 0>} : vector<8x1xi32>
    %cst = arith.constant 0.000000e+00 : f32
    %2 = vector.broadcast %cst : f32 to vector<8x128xf32>
    %c0 = arith.constant 0 : index
    %c0_0 = arith.constant 0 : index
    %3 = vector.load %arg13[%c0, %c0_0] : memref<8x128xf32, #tpu.memory_space<vmem>>, vector<8x128xf32>
    tpu.vector_store %arg13[%c0, %c0_0], %2 {strides = array<i32>} : memref<8x128xf32, #tpu.memory_space<vmem>>, vector<8x128xf32>,
    %c0_i32 = arith.constant 0 : i32
    %c1_i32 = arith.constant 1 : i32
    %4 = arith.muli %c0_i32, %c1_i32 : i32
    %c0_i32_1 = arith.constant 0 : i32
    %5 = arith.addi %c0_i32_1, %4 : i32
    %c128_i32 = arith.constant 128 : i32
    %6 = arith.muli %5, %c128_i32 : i32
    %7 = tpu.assume_multiple %6, 128 : i32
    %c0_2 = arith.constant 0 : index
    %8 = arith.index_cast %7 : i32 to index
    %9 = vector.load %arg1[%c0_2, %8] : memref<1x128xi32, #tpu.memory_space<vmem>>, vector<1x128xi32>
    %10 = vector.broadcast %0 : i32 to vector<1x128xi32>
    %11 = arith.subi %9, %10 : vector<1x128xi32>
    %12 = vector.broadcast %11 : vector<1x128xi32> to vector<8x128xi32>
    %13 = vector.broadcast %1 : vector<8x1xi32> to vector<8x128xi32>
    %14 = arith.cmpi eq, %12, %13 : vector<8x128xi32>
    %15 = arith.extui %14 : vector<8x128xi1> to vector<8x128xi32>
    %16 = arith.sitofp %15 : vector<8x128xi32> to vector<8x128xf32>
    %17 = arith.truncf %16 : vector<8x128xf32> to vector<8x128xbf16>
    %c0_3 = arith.constant 0 : index
    %c0_4 = arith.constant 0 : index
    %18 = vector.load %arg13[%c0_3, %c0_4] : memref<8x128xf32, #tpu.memory_space<vmem>>, vector<8x128xf32>
    %19 = arith.index_cast %7 : i32 to index
    %c0_5 = arith.constant 0 : index
    %20 = vector.load %arg2[%19, %c0_5] : memref<128x128xbf16, #tpu.memory_space<vmem>>, vector<128x128xbf16>
    %cst_6 = arith.constant dense<0.000000e+00> : vector<8x128xf32>
    %21 = tpu.matmul %17, %20, %cst_6 {dimension_numbers = #tpu.dot_dimension_numbers<[1], [0], [0], [1], [0, 0, 1, 1], [], []>} : vector<8x128xbf16>, vector<128x128xbf16>, vector<8x128xf32> -> vector<8x128xf32>
    %22 = arith.addf %18, %21 : vector<8x128xf32>
    %c0_7 = arith.constant 0 : index
    %c0_8 = arith.constant 0 : index
    %23 = vector.load %arg13[%c0_7, %c0_8] : memref<8x128xf32, #tpu.memory_space<vmem>>, vector<8x128xf32>
    tpu.vector_store %arg13[%c0_7, %c0_8], %22 {strides = array<i32>} : memref<8x128xf32, #tpu.memory_space<vmem>>, vector<8x128xf32>,
    %c1_i32_9 = arith.constant 1 : i32
    %c0_10 = arith.constant 0 : index
    %c0_11 = arith.constant 0 : index
    %24 = vector.load %arg3[%c0_10, %c0_11] : memref<8x128xf32, #tpu.memory_space<vmem>>, vector<8x128xf32>
    %c0_12 = arith.constant 0 : index
    %c0_13 = arith.constant 0 : index
    %25 = vector.load %arg13[%c0_12, %c0_13] : memref<8x128xf32, #tpu.memory_space<vmem>>, vector<8x128xf32>
    %26 = arith.truncf %25 : vector<8x128xf32> to vector<8x128xbf16>
    %27 = arith.truncf %24 : vector<8x128xf32> to vector<8x128xbf16>
    %28 = tpu.concatenate %26, %27 in 1 : vector<8x128xbf16>, vector<8x128xbf16> -> vector<8x256xbf16>
    %c0_14 = arith.constant 0 : index
    %c0_15 = arith.constant 0 : index
    %29 = vector.load %arg4[%c0_14, %c0_15] : memref<256x128xbf16, #tpu.memory_space<vmem>>, vector<256x128xbf16>
    %cst_16 = arith.constant dense<0.000000e+00> : vector<8x128xf32>
    %30 = tpu.matmul %28, %29, %cst_16 {dimension_numbers = #tpu.dot_dimension_numbers<[1], [0], [0], [1], [0, 0, 1, 1], [], []>} : vector<8x256xbf16>, vector<256x128xbf16>, vector<8x128xf32> -> vector<8x128xf32>
    %c0_17 = arith.constant 0 : index
    %c0_18 = arith.constant 0 : index
    %31 = vector.load %arg5[%c0_17, %c0_18] : memref<1x128xf32, #tpu.memory_space<vmem>>, vector<1x128xf32>
    %32 = vector.broadcast %31 : vector<1x128xf32> to vector<8x128xf32>
    %33 = arith.addf %30, %32 : vector<8x128xf32>
    %c0_19 = arith.constant 0 : index
    %c0_20 = arith.constant 0 : index
    %34 = vector.load %arg6[%c0_19, %c0_20] : memref<128x128xbf16, #tpu.memory_space<vmem>>, vector<128x128xbf16>
    %c0_21 = arith.constant 0 : index
    %c0_22 = arith.constant 0 : index
    %35 = vector.load %arg7[%c0_21, %c0_22] : memref<1x128xf32, #tpu.memory_space<vmem>>, vector<1x128xf32>
    %c0_23 = arith.constant 0 : index
    %c0_24 = arith.constant 0 : index
    %36 = vector.load %arg8[%c0_23, %c0_24] : memref<128x128xbf16, #tpu.memory_space<vmem>>, vector<128x128xbf16>
    %c0_25 = arith.constant 0 : index
    %c0_26 = arith.constant 0 : index
    %37 = vector.load %arg9[%c0_25, %c0_26] : memref<1x128xf32, #tpu.memory_space<vmem>>, vector<1x128xf32>
    %c0_27 = arith.constant 0 : index
    %c0_28 = arith.constant 0 : index
    %38 = vector.load %arg10[%c0_27, %c0_28] : memref<1x128xf32, #tpu.memory_space<vmem>>, vector<1x128xf32>
    %c0_29 = arith.constant 0 : index
    %c0_30 = arith.constant 0 : index
    %39 = vector.load %arg11[%c0_29, %c0_30] : memref<1x128xf32, #tpu.memory_space<vmem>>, vector<1x128xf32>
    %cst_31 = arith.constant 0.000000e+00 : f32
    %40 = vector.broadcast %cst_31 : f32 to vector<8x128xf32>
    %41 = arith.maximumf %33, %40 : vector<8x128xf32>
    %42 = arith.truncf %41 : vector<8x128xf32> to vector<8x128xbf16>
    %cst_32 = arith.constant dense<0.000000e+00> : vector<8x128xf32>
    %43 = tpu.matmul %42, %34, %cst_32 {dimension_numbers = #tpu.dot_dimension_numbers<[1], [0], [0], [1], [0, 0, 1, 1], [], []>} : vector<8x128xbf16>, vector<128x128xbf16>, vector<8x128xf32> -> vector<8x128xf32>
    %44 = vector.broadcast %35 : vector<1x128xf32> to vector<8x128xf32>
    %45 = arith.addf %43, %44 : vector<8x128xf32>
    %cst_33 = arith.constant 0.000000e+00 : f32
    %46 = vector.broadcast %cst_33 : f32 to vector<8x128xf32>
    %47 = arith.maximumf %45, %46 : vector<8x128xf32>
    %48 = arith.truncf %47 : vector<8x128xf32> to vector<8x128xbf16>
    %cst_34 = arith.constant dense<0.000000e+00> : vector<8x128xf32>
    %49 = tpu.matmul %48, %36, %cst_34 {dimension_numbers = #tpu.dot_dimension_numbers<[1], [0], [0], [1], [0, 0, 1, 1], [], []>} : vector<8x128xbf16>, vector<128x128xbf16>, vector<8x128xf32> -> vector<8x128xf32>
    %50 = vector.broadcast %37 : vector<1x128xf32> to vector<8x128xf32>
    %51 = arith.addf %49, %50 : vector<8x128xf32>
    %cst_35 = arith.constant dense<0.000000e+00> : vector<8xf32>
    %52 = vector.multi_reduction <add>, %51, %cst_35 [1] : vector<8x128xf32> to vector<8xf32>
    %53 = vector.shape_cast %52 : vector<8xf32> to vector<8x1xf32>
    %cst_36 = arith.constant 1.280000e+02 : f32
    %54 = vector.broadcast %cst_36 : f32 to vector<8x1xf32>
    %55 = arith.divf %53, %54 : vector<8x1xf32>
    %56 = vector.broadcast %55 : vector<8x1xf32> to vector<8x128xf32>
    %57 = arith.subf %51, %56 : vector<8x128xf32>
    %58 = arith.mulf %57, %57 : vector<8x128xf32>
    %cst_37 = arith.constant dense<0.000000e+00> : vector<8xf32>
    %59 = vector.multi_reduction <add>, %58, %cst_37 [1] : vector<8x128xf32> to vector<8xf32>
    %60 = vector.shape_cast %59 : vector<8xf32> to vector<8x1xf32>
    %cst_38 = arith.constant 1.280000e+02 : f32
    %61 = vector.broadcast %cst_38 : f32 to vector<8x1xf32>
    %62 = arith.divf %60, %61 : vector<8x1xf32>
    %63 = vector.broadcast %55 : vector<8x1xf32> to vector<8x128xf32>
    %64 = arith.subf %51, %63 : vector<8x128xf32>
    %cst_39 = arith.constant 9.99999974E-6 : f32
    %65 = vector.broadcast %cst_39 : f32 to vector<8x1xf32>
    %66 = arith.addf %62, %65 : vector<8x1xf32>
    %67 = math.rsqrt %66 : vector<8x1xf32>
    %68 = vector.broadcast %67 : vector<8x1xf32> to vector<8x128xf32>
    %69 = arith.mulf %64, %68 : vector<8x128xf32>
    %70 = vector.broadcast %38 : vector<1x128xf32> to vector<8x128xf32>
    %71 = arith.mulf %69, %70 : vector<8x128xf32>
    %72 = vector.broadcast %39 : vector<1x128xf32> to vector<8x128xf32>
    %73 = arith.addf %71, %72 : vector<8x128xf32>
    %74 = arith.addf %24, %73 : vector<8x128xf32>
    %c0_40 = arith.constant 0 : index
    %c0_41 = arith.constant 0 : index
    %75 = vector.load %arg12[%c0_40, %c0_41] : memref<8x128xf32, #tpu.memory_space<vmem>>, vector<8x128xf32>
    tpu.vector_store %arg12[%c0_40, %c0_41], %74 {strides = array<i32>} : memref<8x128xf32, #tpu.memory_space<vmem>>, vector<8x128xf32>,
    return
  }
  func.func @transform_0(%arg0: i32) -> (i32, i32) {
    %c0_i32 = arith.constant 0 : i32
    %c0_i32_0 = arith.constant 0 : i32
    %c0_i32_1 = arith.constant 0 : i32
    return %c0_i32, %c0_i32_0 : i32, i32
  }
  func.func @transform_1(%arg0: i32) -> (i32, i32) {
    %c0_i32 = arith.constant 0 : i32
    %c0_i32_0 = arith.constant 0 : i32
    %c0_i32_1 = arith.constant 0 : i32
    return %c0_i32, %c0_i32_0 : i32, i32
  }
  func.func @transform_2(%arg0: i32) -> (i32, i32) {
    %c0_i32 = arith.constant 0 : i32
    %c0_i32_0 = arith.constant 0 : i32
    return %arg0, %c0_i32 : i32, i32
  }
  func.func @transform_3(%arg0: i32) -> (i32, i32) {
    %c0_i32 = arith.constant 0 : i32
    %c0_i32_0 = arith.constant 0 : i32
    %c0_i32_1 = arith.constant 0 : i32
    return %c0_i32, %c0_i32_0 : i32, i32
  }
  func.func @transform_4(%arg0: i32) -> (i32, i32) {
    %c0_i32 = arith.constant 0 : i32
    %c0_i32_0 = arith.constant 0 : i32
    %c0_i32_1 = arith.constant 0 : i32
    return %c0_i32, %c0_i32_0 : i32, i32
  }
  func.func @transform_5(%arg0: i32) -> (i32, i32) {
    %c0_i32 = arith.constant 0 : i32
    %c0_i32_0 = arith.constant 0 : i32
    %c0_i32_1 = arith.constant 0 : i32
    return %c0_i32, %c0_i32_0 : i32, i32
  }
  func.func @transform_6(%arg0: i32) -> (i32, i32) {
    %c0_i32 = arith.constant 0 : i32
    %c0_i32_0 = arith.constant 0 : i32
    %c0_i32_1 = arith.constant 0 : i32
    return %c0_i32, %c0_i32_0 : i32, i32
  }
  func.func @transform_7(%arg0: i32) -> (i32, i32) {
    %c0_i32 = arith.constant 0 : i32
    %c0_i32_0 = arith.constant 0 : i32
    %c0_i32_1 = arith.constant 0 : i32
    return %c0_i32, %c0_i32_0 : i32, i32
  }
  func.func @transform_8(%arg0: i32) -> (i32, i32) {
    %c0_i32 = arith.constant 0 : i32
    %c0_i32_0 = arith.constant 0 : i32
    %c0_i32_1 = arith.constant 0 : i32
    return %c0_i32, %c0_i32_0 : i32, i32
  }
  func.func @transform_9(%arg0: i32) -> (i32, i32) {
    %c0_i32 = arith.constant 0 : i32
    %c0_i32_0 = arith.constant 0 : i32
    %c0_i32_1 = arith.constant 0 : i32
    return %c0_i32, %c0_i32_0 : i32, i32
  }
  func.func @transform_10(%arg0: i32) -> (i32, i32) {
    %c0_i32 = arith.constant 0 : i32
    %c0_i32_0 = arith.constant 0 : i32
    %c0_i32_1 = arith.constant 0 : i32
    return %c0_i32, %c0_i32_0 : i32, i32
  }
  func.func @transform_11(%arg0: i32) -> (i32, i32) {
    %c0_i32 = arith.constant 0 : i32
    %c0_i32_0 = arith.constant 0 : i32
    return %arg0, %c0_i32 : i32, i32
  }
}

</mosaic_0001>

<llo_original>
// kernel: processor_forward.5
$region0: #{processor_forward.5}
  #allocation0 [shape = 'u32[]', space=smem, size = 0x4, offset = 0x4, fixed_abs, tag = 'smem constant byte address 0x4 - core index']
  #allocation1 [shape = 'u32[144,128]{1,0:T(1,128)}', space=vmem, size = 0x12000, scoped, tag = 'internal scratch']
  #allocation2 [shape = 'f32[8,128]{1,0:T(8,128)}', space=vmem, size = 0x1000, scoped, tag = 'scratch operand']
  %s0 = inlined_call_operand.vmem [shape: s32[1,128], index: 0, kind: input, shape index: {}]
  %s1 = inlined_call_operand.vmem [shape: bf16[128,128], index: 1, kind: input, shape index: {}]
  %s2 = inlined_call_operand.vmem [shape: f32[16,128], index: 2, kind: input, shape index: {}, may-alias: {2,11}]
  %s3 = inlined_call_operand.vmem [shape: bf16[256,128], index: 3, kind: input, shape index: {}]
  %s4 = inlined_call_operand.vmem [shape: f32[1,128], index: 4, kind: input, shape index: {}]
  %s5 = inlined_call_operand.vmem [shape: bf16[128,128], index: 5, kind: input, shape index: {}]
  %s6 = inlined_call_operand.vmem [shape: f32[1,128], index: 6, kind: input, shape index: {}]
  %s7 = inlined_call_operand.vmem [shape: bf16[128,128], index: 7, kind: input, shape index: {}]
  %s8 = inlined_call_operand.vmem [shape: f32[1,128], index: 8, kind: input, shape index: {}]
  %s9 = inlined_call_operand.vmem [shape: f32[1,128], index: 9, kind: input, shape index: {}]
  %s10 = inlined_call_operand.vmem [shape: f32[1,128], index: 10, kind: input, shape index: {}]
  %s11 = inlined_call_operand.vmem [shape: f32[16,128], index: 11, kind: output, shape index: {}, may-alias: {2,11}]
  %s12 = sld [smem:[#allocation0]]
  $region77: #{processor_forward.5} parent=0
    _
  %s14 = ssub.s32 1, %s12
  %s15 = scalar_select 0, %s14, %s12
  loop: start=0, step=1, limit=4
  $region2: #{processor_forward.5} parent=0 // loop_pre_header
    _
  $region3: #{processor_forward.5} parent=0 // loop_header
    %s17 = sphi 0, %s21
    %p18 = scmp.ge.s32.totalorder %s17, 4
    %s25 = sphi 0, %s25
    %s27 = sphi 0, %s25
    %s28 = sphi 0, %s27
    %s42 = sphi 0, %s28
    %s46 = sphi 0, %s46
    %s48 = sphi 0, %s46
    %s49 = sphi 0, %s48
    %s63 = sphi 0, %s49
    %s69 = sphi 0, %s71
    %s72 = sphi 0, %s69
    %s73 = sphi 0, %s72
    %s89 = sphi 0, %s73
    %s93 = sphi 0, %s93
    %s95 = sphi 0, %s93
    %s96 = sphi 0, %s95
    %s110 = sphi 0, %s96
    %s114 = sphi 0, %s114
    %s116 = sphi 0, %s114
    %s117 = sphi 0, %s116
    %s131 = sphi 0, %s117
    %s135 = sphi 0, %s135
    %s137 = sphi 0, %s135
    %s138 = sphi 0, %s137
    %s152 = sphi 0, %s138
    %s156 = sphi 0, %s156
    %s158 = sphi 0, %s156
    %s159 = sphi 0, %s158
    %s173 = sphi 0, %s159
    %s177 = sphi 0, %s177
    %s179 = sphi 0, %s177
    %s180 = sphi 0, %s179
    %s194 = sphi 0, %s180
    %s198 = sphi 0, %s198
    %s200 = sphi 0, %s198
    %s201 = sphi 0, %s200
    %s215 = sphi 0, %s201
    %s219 = sphi 0, %s219
    %s221 = sphi 0, %s219
    %s222 = sphi 0, %s221
    %s236 = sphi 0, %s222
    %s240 = sphi 0, %s240
    %s242 = sphi 0, %s240
    %s243 = sphi 0, %s242
    %s257 = sphi 0, %s243
    %s263 = sphi 0, %s265
    %s266 = sphi 0, %s263
    %s267 = sphi 0, %s266
    %s283 = sphi 0, %s267
  $region4: #{processor_forward.5} parent=0 // loop_header_branch
    %20 = sbr.rel (%p18) target = $region8
  $region5: #{processor_forward.5} parent=0 // loop_body
    %s22 = ssub.s32 %s17, 1
    %s23 = ssub.s32 %s17, 2
    %s24 = sadd.s32 %s17, 1
    %s26 = sadd.s32 %s25, 1
    %p29 = scmp.eq.s32.totalorder %s17, 1
    %p30 = scmp.ne.s32.totalorder %s25, %s27
    %p31 = scmp.eq.s32.totalorder %s17, 0
    %p32 = por %p30, %p31
    %p33 = scmp.ne.s32.totalorder %s25, %s27
    %p34 = scmp.eq.s32.totalorder %s22, 1
    %p35 = por %p33, %p34
    %p36 = scmp.ne.s32.totalorder %s27, %s28
    %p37 = scmp.eq.s32.totalorder %s22, 0
    %p38 = por %p36, %p37
    %p39 = scmp.ne.s32.totalorder %s27, %s28
    %p40 = scmp.eq.s32.totalorder %s23, 1
    %p41 = por %p39, %p40
    %p43 = scmp.ne.s32.totalorder %s28, %s42
    %p44 = scmp.eq.s32.totalorder %s23, 0
    %p45 = por %p43, %p44
    %s47 = sadd.s32 %s46, 1
    %p50 = scmp.eq.s32.totalorder %s17, 1
    %p51 = scmp.ne.s32.totalorder %s46, %s48
    %p52 = scmp.eq.s32.totalorder %s17, 0
    %p53 = por %p51, %p52
    %p54 = scmp.ne.s32.totalorder %s46, %s48
    %p55 = scmp.eq.s32.totalorder %s22, 1
    %p56 = por %p54, %p55
    %p57 = scmp.ne.s32.totalorder %s48, %s49
    %p58 = scmp.eq.s32.totalorder %s22, 0
    %p59 = por %p57, %p58
    %p60 = scmp.ne.s32.totalorder %s48, %s49
    %p61 = scmp.eq.s32.totalorder %s23, 1
    %p62 = por %p60, %p61
    %p64 = scmp.ne.s32.totalorder %s49, %s63
    %p65 = scmp.eq.s32.totalorder %s23, 0
    %p66 = por %p64, %p65
    %s67 = ssub.s32 %s17, %s24
    %p68 = scmp.eq.s32.totalorder %s67, 0
    %s70 = sadd.s32 %s69, 1
    %s71 = scalar_select %p68, %s69, %s70
    %p74 = pneg %p68
    %p75 = scmp.eq.s32.totalorder %s17, 1
    %p76 = por %p74, %p75
    %p77 = scmp.ne.s32.totalorder %s69, %s72
    %p78 = scmp.eq.s32.totalorder %s17, 0
    %p79 = por %p77, %p78
    %p80 = scmp.ne.s32.totalorder %s69, %s72
    %p81 = scmp.eq.s32.totalorder %s22, 1
    %p82 = por %p80, %p81
    %p83 = scmp.ne.s32.totalorder %s72, %s73
    %p84 = scmp.eq.s32.totalorder %s22, 0
    %p85 = por %p83, %p84
    %p86 = scmp.ne.s32.totalorder %s72, %s73
    %p87 = scmp.eq.s32.totalorder %s23, 1
    %p88 = por %p86, %p87
    %p90 = scmp.ne.s32.totalorder %s73, %s89
    %p91 = scmp.eq.s32.totalorder %s23, 0
    %p92 = por %p90, %p91
    %s94 = sadd.s32 %s93, 1
    %p97 = scmp.eq.s32.totalorder %s17, 1
    %p98 = scmp.ne.s32.totalorder %s93, %s95
    %p99 = scmp.eq.s32.totalorder %s17, 0
    %p100 = por %p98, %p99
    %p101 = scmp.ne.s32.totalorder %s93, %s95
    %p102 = scmp.eq.s32.totalorder %s22, 1
    %p103 = por %p101, %p102
    %p104 = scmp.ne.s32.totalorder %s95, %s96
    %p105 = scmp.eq.s32.totalorder %s22, 0
    %p106 = por %p104, %p105
    %p107 = scmp.ne.s32.totalorder %s95, %s96
    %p108 = scmp.eq.s32.totalorder %s23, 1
    %p109 = por %p107, %p108
    %p111 = scmp.ne.s32.totalorder %s96, %s110
    %p112 = scmp.eq.s32.totalorder %s23, 0
    %p113 = por %p111, %p112
    %s115 = sadd.s32 %s114, 1
    %p118 = scmp.eq.s32.totalorder %s17, 1
    %p119 = scmp.ne.s32.totalorder %s114, %s116
    %p120 = scmp.eq.s32.totalorder %s17, 0
    %p121 = por %p119, %p120
    %p122 = scmp.ne.s32.totalorder %s114, %s116
    %p123 = scmp.eq.s32.totalorder %s22, 1
    %p124 = por %p122, %p123
    %p125 = scmp.ne.s32.totalorder %s116, %s117
    %p126 = scmp.eq.s32.totalorder %s22, 0
    %p127 = por %p125, %p126
    %p128 = scmp.ne.s32.totalorder %s116, %s117
    %p129 = scmp.eq.s32.totalorder %s23, 1
    %p130 = por %p128, %p129
    %p132 = scmp.ne.s32.totalorder %s117, %s131
    %p133 = scmp.eq.s32.totalorder %s23, 0
    %p134 = por %p132, %p133
    %s136 = sadd.s32 %s135, 1
    %p139 = scmp.eq.s32.totalorder %s17, 1
    %p140 = scmp.ne.s32.totalorder %s135, %s137
    %p141 = scmp.eq.s32.totalorder %s17, 0
    %p142 = por %p140, %p141
    %p143 = scmp.ne.s32.totalorder %s135, %s137
    %p144 = scmp.eq.s32.totalorder %s22, 1
    %p145 = por %p143, %p144
    %p146 = scmp.ne.s32.totalorder %s137, %s138
    %p147 = scmp.eq.s32.totalorder %s22, 0
    %p148 = por %p146, %p147
    %p149 = scmp.ne.s32.totalorder %s137, %s138
    %p150 = scmp.eq.s32.totalorder %s23, 1
    %p151 = por %p149, %p150
    %p153 = scmp.ne.s32.totalorder %s138, %s152
    %p154 = scmp.eq.s32.totalorder %s23, 0
    %p155 = por %p153, %p154
    %s157 = sadd.s32 %s156, 1
    %p160 = scmp.eq.s32.totalorder %s17, 1
    %p161 = scmp.ne.s32.totalorder %s156, %s158
    %p162 = scmp.eq.s32.totalorder %s17, 0
    %p163 = por %p161, %p162
    %p164 = scmp.ne.s32.totalorder %s156, %s158
    %p165 = scmp.eq.s32.totalorder %s22, 1
    %p166 = por %p164, %p165
    %p167 = scmp.ne.s32.totalorder %s158, %s159
    %p168 = scmp.eq.s32.totalorder %s22, 0
    %p169 = por %p167, %p168
    %p170 = scmp.ne.s32.totalorder %s158, %s159
    %p171 = scmp.eq.s32.totalorder %s23, 1
    %p172 = por %p170, %p171
    %p174 = scmp.ne.s32.totalorder %s159, %s173
    %p175 = scmp.eq.s32.totalorder %s23, 0
    %p176 = por %p174, %p175
    %s178 = sadd.s32 %s177, 1
    %p181 = scmp.eq.s32.totalorder %s17, 1
    %p182 = scmp.ne.s32.totalorder %s177, %s179
    %p183 = scmp.eq.s32.totalorder %s17, 0
    %p184 = por %p182, %p183
    %p185 = scmp.ne.s32.totalorder %s177, %s179
    %p186 = scmp.eq.s32.totalorder %s22, 1
    %p187 = por %p185, %p186
    %p188 = scmp.ne.s32.totalorder %s179, %s180
    %p189 = scmp.eq.s32.totalorder %s22, 0
    %p190 = por %p188, %p189
    %p191 = scmp.ne.s32.totalorder %s179, %s180
    %p192 = scmp.eq.s32.totalorder %s23, 1
    %p193 = por %p191, %p192
    %p195 = scmp.ne.s32.totalorder %s180, %s194
    %p196 = scmp.eq.s32.totalorder %s23, 0
    %p197 = por %p195, %p196
    %s199 = sadd.s32 %s198, 1
    %p202 = scmp.eq.s32.totalorder %s17, 1
    %p203 = scmp.ne.s32.totalorder %s198, %s200
    %p204 = scmp.eq.s32.totalorder %s17, 0
    %p205 = por %p203, %p204
    %p206 = scmp.ne.s32.totalorder %s198, %s200
    %p207 = scmp.eq.s32.totalorder %s22, 1
    %p208 = por %p206, %p207
    %p209 = scmp.ne.s32.totalorder %s200, %s201
    %p210 = scmp.eq.s32.totalorder %s22, 0
    %p211 = por %p209, %p210
    %p212 = scmp.ne.s32.totalorder %s200, %s201
    %p213 = scmp.eq.s32.totalorder %s23, 1
    %p214 = por %p212, %p213
    %p216 = scmp.ne.s32.totalorder %s201, %s215
    %p217 = scmp.eq.s32.totalorder %s23, 0
    %p218 = por %p216, %p217
    %s220 = sadd.s32 %s219, 1
    %p223 = scmp.eq.s32.totalorder %s17, 1
    %p224 = scmp.ne.s32.totalorder %s219, %s221
    %p225 = scmp.eq.s32.totalorder %s17, 0
    %p226 = por %p224, %p225
    %p227 = scmp.ne.s32.totalorder %s219, %s221
    %p228 = scmp.eq.s32.totalorder %s22, 1
    %p229 = por %p227, %p228
    %p230 = scmp.ne.s32.totalorder %s221, %s222
    %p231 = scmp.eq.s32.totalorder %s22, 0
    %p232 = por %p230, %p231
    %p233 = scmp.ne.s32.totalorder %s221, %s222
    %p234 = scmp.eq.s32.totalorder %s23, 1
    %p235 = por %p233, %p234
    %p237 = scmp.ne.s32.totalorder %s222, %s236
    %p238 = scmp.eq.s32.totalorder %s23, 0
    %p239 = por %p237, %p238
    %s241 = sadd.s32 %s240, 1
    %p244 = scmp.eq.s32.totalorder %s17, 1
    %p245 = scmp.ne.s32.totalorder %s240, %s242
    %p246 = scmp.eq.s32.totalorder %s17, 0
    %p247 = por %p245, %p246
    %p248 = scmp.ne.s32.totalorder %s240, %s242
    %p249 = scmp.eq.s32.totalorder %s22, 1
    %p250 = por %p248, %p249
    %p251 = scmp.ne.s32.totalorder %s242, %s243
    %p252 = scmp.eq.s32.totalorder %s22, 0
    %p253 = por %p251, %p252
    %p254 = scmp.ne.s32.totalorder %s242, %s243
    %p255 = scmp.eq.s32.totalorder %s23, 1
    %p256 = por %p254, %p255
    %p258 = scmp.ne.s32.totalorder %s243, %s257
    %p259 = scmp.eq.s32.totalorder %s23, 0
    %p260 = por %p258, %p259
    %s261 = ssub.s32 %s17, %s24
    %p262 = scmp.eq.s32.totalorder %s261, 0
    %s264 = sadd.s32 %s263, 1
    %s265 = scalar_select %p262, %s263, %s264
    %p268 = pneg %p262
    %p269 = scmp.eq.s32.totalorder %s17, 1
    %p270 = por %p268, %p269
    %p271 = scmp.ne.s32.totalorder %s263, %s266
    %p272 = scmp.eq.s32.totalorder %s17, 0
    %p273 = por %p271, %p272
    %p274 = scmp.ne.s32.totalorder %s263, %s266
    %p275 = scmp.eq.s32.totalorder %s22, 1
    %p276 = por %p274, %p275
    %p277 = scmp.ne.s32.totalorder %s266, %s267
    %p278 = scmp.eq.s32.totalorder %s22, 0
    %p279 = por %p277, %p278
    %p280 = scmp.ne.s32.totalorder %s266, %s267
    %p281 = scmp.eq.s32.totalorder %s23, 1
    %p282 = por %p280, %p281
    %p284 = scmp.ne.s32.totalorder %s267, %s283
    %p285 = scmp.eq.s32.totalorder %s23, 0
    %p286 = por %p284, %p285
    %p287 = scmp.le.s32.totalorder 1, %s17
    %p288 = scmp.lt.s32.totalorder %s17, 3
    %p289 = pnand %p287, %p288
    %p290 = pneg %p289
    // Predicated region
    $region9: #{processor_forward.5} parent=5 // pred_check
      _
    $region10: #{processor_forward.5} parent=5 // pred_check_branch
      %292 = sbr.rel (%p289) target = $region12
    $region11: #{processor_forward.5} parent=5 // pred_region
      %s293 = ssub.s32 %s17, 1
      // Predicated region
      $region13: #{processor_forward.5} parent=11 // pred_check
        %p294 = pneg %p38
      $region14: #{processor_forward.5} parent=11 // pred_check_branch
        %296 = sbr.rel (%p294) target = $region16
      $region15: #{processor_forward.5} parent=11 // pred_region
        _
      $region16: #{processor_forward.5} parent=11 // pred_fallthru
        _
      // Predicated region
      $region17: #{processor_forward.5} parent=11 // pred_check
        %p297 = pneg %p59
      $region18: #{processor_forward.5} parent=11 // pred_check_branch
        %299 = sbr.rel (%p297) target = $region20
      $region19: #{processor_forward.5} parent=11 // pred_region
        _
      $region20: #{processor_forward.5} parent=11 // pred_fallthru
        _
      // Predicated region
      $region21: #{processor_forward.5} parent=11 // pred_check
        %p300 = pneg %p106
      $region22: #{processor_forward.5} parent=11 // pred_check_branch
        %302 = sbr.rel (%p300) target = $region24
      $region23: #{processor_forward.5} parent=11 // pred_region
        _
      $region24: #{processor_forward.5} parent=11 // pred_fallthru
        _
      // Predicated region
      $region25: #{processor_forward.5} parent=11 // pred_check
        %p303 = pneg %p127
      $region26: #{processor_forward.5} parent=11 // pred_check_branch
        %305 = sbr.rel (%p303) target = $region28
      $region27: #{processor_forward.5} parent=11 // pred_region
        _
      $region28: #{processor_forward.5} parent=11 // pred_fallthru
        _
      // Predicated region
      $region29: #{processor_forward.5} parent=11 // pred_check
        %p306 = pneg %p148
      $region30: #{processor_forward.5} parent=11 // pred_check_branch
        %308 = sbr.rel (%p306) target = $region32
      $region31: #{processor_forward.5} parent=11 // pred_region
        _
      $region32: #{processor_forward.5} parent=11 // pred_fallthru
        _
      // Predicated region
      $region33: #{processor_forward.5} parent=11 // pred_check
        %p309 = pneg %p169
      $region34: #{processor_forward.5} parent=11 // pred_check_branch
        %311 = sbr.rel (%p309) target = $region36
      $region35: #{processor_forward.5} parent=11 // pred_region
        _
      $region36: #{processor_forward.5} parent=11 // pred_fallthru
        _
      // Predicated region
      $region37: #{processor_forward.5} parent=11 // pred_check
        %p312 = pneg %p190
      $region38: #{processor_forward.5} parent=11 // pred_check_branch
        %314 = sbr.rel (%p312) target = $region40
      $region39: #{processor_forward.5} parent=11 // pred_region
        _
      $region40: #{processor_forward.5} parent=11 // pred_fallthru
        _
      // Predicated region
      $region41: #{processor_forward.5} parent=11 // pred_check
        %p315 = pneg %p211
      $region42: #{processor_forward.5} parent=11 // pred_check_branch
        %317 = sbr.rel (%p315) target = $region44
      $region43: #{processor_forward.5} parent=11 // pred_region
        _
      $region44: #{processor_forward.5} parent=11 // pred_fallthru
        _
      // Predicated region
      $region45: #{processor_forward.5} parent=11 // pred_check
        %p318 = pneg %p232
      $region46: #{processor_forward.5} parent=11 // pred_check_branch
        %320 = sbr.rel (%p318) target = $region48
      $region47: #{processor_forward.5} parent=11 // pred_region
        _
      $region48: #{processor_forward.5} parent=11 // pred_fallthru
        _
      // Predicated region
      $region49: #{processor_forward.5} parent=11 // pred_check
        %p321 = pneg %p253
      $region50: #{processor_forward.5} parent=11 // pred_check_branch
        %323 = sbr.rel (%p321) target = $region52
      $region51: #{processor_forward.5} parent=11 // pred_region
        _
      $region52: #{processor_forward.5} parent=11 // pred_fallthru
        _
    $region12: #{processor_forward.5} parent=5 // pred_fallthru
      _
    %p324 = scmp.lt.s32.totalorder %s17, 2
    // Predicated region
    $region53: #{processor_forward.5} parent=5 // pred_check
      %p325 = pneg %p324
    $region54: #{processor_forward.5} parent=5 // pred_check_branch
      %327 = sbr.rel (%p325) target = $region56
    $region55: #{processor_forward.5} parent=5 // pred_region
      // Predicated region
      $region57: #{processor_forward.5} parent=55 // pred_check
        %p328 = pneg %p79
      $region58: #{processor_forward.5} parent=55 // pred_check_branch
        %330 = sbr.rel (%p328) target = $region60
      $region59: #{processor_forward.5} parent=55 // pred_region
        %p331 = scmp.lt.s32.totalorder %s17, 1
        %s332 = scalar_select %p331, %s17, 1
        %s333 = smul.addr %s332, 8
        %s334 = scalar_lea.vmem %s2, %s333
      $region60: #{processor_forward.5} parent=55 // pred_fallthru
        _
    $region56: #{processor_forward.5} parent=5 // pred_fallthru
      _
    %p335 = scmp.le.s32.totalorder 1, %s17
    %p336 = scmp.lt.s32.totalorder %s17, 3
    %p337 = pnand %p335, %p336
    %p338 = pneg %p337
    // Predicated region
    $region61: #{processor_forward.5} parent=5 // pred_check
      _
    $region62: #{processor_forward.5} parent=5 // pred_check_branch
      %340 = sbr.rel (%p337) target = $region64
    $region63: #{processor_forward.5} parent=5 // pred_region
      %s341 = ssub.s32 %s17, 1
      %p342 = pneg %p38
      %p343 = pneg %p35
      %p344 = pneg %p59
      %p345 = pneg %p56
      %p346 = scmp.lt.s32.totalorder %s22, 1
      %s347 = scalar_select %p346, %s22, 1
      %s348 = smul.addr %s347, 8
      %s349 = scalar_lea.vmem %s2, %s348
      %p350 = pneg %p85
      %p351 = pneg %p82
      %p352 = pneg %p106
      %p353 = pneg %p103
      %p354 = pneg %p127
      %p355 = pneg %p124
      %p356 = pneg %p148
      %p357 = pneg %p145
      %p358 = pneg %p169
      %p359 = pneg %p166
      %p360 = pneg %p190
      %p361 = pneg %p187
      %p362 = pneg %p211
      %p363 = pneg %p208
      %p364 = pneg %p232
      %p365 = pneg %p229
      %p366 = pneg %p253
      %p367 = pneg %p250
      %p368 = pneg %p279
      %p369 = pneg %p276
      %p370 = scmp.lt.s32.totalorder %s22, 1
      %s371 = scalar_select %p370, %s22, 1
      %s372 = smul.addr %s371, 8
      %s373 = scalar_lea.vmem %s11, %s372
      %p374 = scmp.lt.s32.totalorder %s22, 1
      %s375 = scalar_select %p374, %s22, 1
      %s376 = smul.addr %s375, 8
      %s377 = scalar_lea.vmem %s2, %s376
      %p378 = scmp.lt.s32.totalorder %s22, 1
      %s379 = scalar_select %p378, %s22, 1
      %s380 = smul.addr %s379, 8
      %s381 = scalar_lea.vmem %s11, %s380
      %s383 = smul.u32 %s22, 8
      %v384 = vlaneseq
      %v385 = vshrl.u32 %v384, 7
      %386 = vst [vmem:[#allocation2] sm:$0xff] 0.0
      %v387 = vld [vmem:[%s0] sm:$0x1]
      %v388 = vstv %s383
      %v389 = vsub.s32 %v387, %v388
      %v390 = vlaneseq
      %v391 = vshrl.u32 %v390, 7
      %v392 = vsub.s32 0, %v391
      %v393 = vrot.slane %v389, %v392
      %vm394 = vcmp.eq.s32.totalorder %v393, %v385
      %v395 = vsel %vm394, 1, 0
      %v396 = vcvt.s32.f32 %v395
      %v397 = vpack.c.bf16 %v396, %v396
      %v398 = vld [vmem:[#allocation2] sm:$0xff]
      %v399 = vld [vmem:[%s1] sm:$0xf]
      %v400 = vld [vmem:[%s1 + $0x4] sm:$0xf]
      %v401 = vld [vmem:[%s1 + $0x8] sm:$0xf]
      %v402 = vld [vmem:[%s1 + $0xc] sm:$0xf]
      %v403 = vld [vmem:[%s1 + $0x10] sm:$0xf]
      %v404 = vld [vmem:[%s1 + $0x14] sm:$0xf]
      %v405 = vld [vmem:[%s1 + $0x18] sm:$0xf]
      %v406 = vld [vmem:[%s1 + $0x1c] sm:$0xf]
      %v407 = vld [vmem:[%s1 + $0x20] sm:$0xf]
      %v408 = vld [vmem:[%s1 + $0x24] sm:$0xf]
      %v409 = vld [vmem:[%s1 + $0x28] sm:$0xf]
      %v410 = vld [vmem:[%s1 + $0x2c] sm:$0xf]
      %v411 = vld [vmem:[%s1 + $0x30] sm:$0xf]
      %v412 = vld [vmem:[%s1 + $0x34] sm:$0xf]
      %v413 = vld [vmem:[%s1 + $0x38] sm:$0xf]
      %v414 = vld [vmem:[%s1 + $0x3c] sm:$0xf]
      %v431 = vunpack.c.l.b16 %v399
      %v432 = vunpack.c.l.b16 %v400
      %v433 = vunpack.c.l.b16 %v401
      %v434 = vunpack.c.l.b16 %v402
      %v435 = vunpack.c.l.b16 %v403
      %v436 = vunpack.c.l.b16 %v404
      %v437 = vunpack.c.l.b16 %v405
      %v438 = vunpack.c.l.b16 %v406
      %v439 = vunpack.c.l.b16 %v407
      %v440 = vunpack.c.l.b16 %v408
      %v441 = vunpack.c.l.b16 %v409
      %v442 = vunpack.c.l.b16 %v410
      %v443 = vunpack.c.l.b16 %v411
      %v444 = vunpack.c.l.b16 %v412
      %v445 = vunpack.c.l.b16 %v413
      %v446 = vunpack.c.l.b16 %v414
      %v447 = vpack.c.b16 %v432, %v431
      %v448 = vpack.c.b16 %v434, %v433
      %v449 = vpack.c.b16 %v436, %v435
      %v450 = vpack.c.b16 %v438, %v437
      %v451 = vpack.c.b16 %v440, %v439
      %v452 = vpack.c.b16 %v442, %v441
      %v453 = vpack.c.b16 %v444, %v443
      %v454 = vpack.c.b16 %v446, %v445
      %463 = vmatprep.subr.bf16.mxu0 0
      %464 = vmatpush1.bf16.msra.mxu0 %v454
      %465 = vmatprep.subr.bf16.mxu0 0
      %466 = vmatpush1.bf16.msra.mxu0 %v453
      %467 = vmatprep.subr.bf16.mxu0 0
      %468 = vmatpush1.bf16.msra.mxu0 %v452
      %469 = vmatprep.subr.bf16.mxu0 0
      %470 = vmatpush1.bf16.msra.mxu0 %v451
      %471 = vmatprep.subr.bf16.mxu0 0
      %472 = vmatpush1.bf16.msra.mxu0 %v450
      %473 = vmatprep.subr.bf16.mxu0 0
      %474 = vmatpush1.bf16.msra.mxu0 %v449
      %475 = vmatprep.subr.bf16.mxu0 0
      %476 = vmatpush1.bf16.msra.mxu0 %v448
      %477 = vmatprep.subr.bf16.mxu0 0
      %478 = vmatpush1.bf16.msra.mxu0 %v447
      %479 = vmatprep.subr.bf16.mxu0 0
      %480 = vmatpush2.bf16.msra.mxu0 0
      %481 = vmatprep.subr.bf16.mxu0 0
      %482 = vmatpush2.bf16.msra.mxu0 0
      %483 = vmatprep.subr.bf16.mxu0 0
      %484 = vmatpush2.bf16.msra.mxu0 0
      %485 = vmatprep.subr.bf16.mxu0 0
      %486 = vmatpush2.bf16.msra.mxu0 0
      %487 = vmatprep.subr.bf16.mxu0 0
      %488 = vmatpush2.bf16.msra.mxu0 0
      %489 = vmatprep.subr.bf16.mxu0 0
      %490 = vmatpush2.bf16.msra.mxu0 0
      %491 = vmatprep.subr.bf16.mxu0 0
      %492 = vmatpush2.bf16.msra.mxu0 0
      %493 = vmatprep.subr.bf16.mxu0 0
      %494 = vmatpush2.bf16.msra.mxu0 0
      %495 = vmatprep.mubr.bf16.mxu0 0
      %496 = vmatmul.mubr.bf16.gmra.mxu0 %v397
      %v497 = vpop.f32.mrf.mxu0
      %v498 = vadd.f32 0.0, %v497
      %v499 = vpop.f32.mrf.mxu0
      %v500 = vpop.f32.mrf.mxu0
      %v501 = vpop.f32.mrf.mxu0
      %502 = vdwg.mxu0
      %v503 = vadd.f32 %v398, %v498
      %504 = vst [vmem:[#allocation2] sm:$0xff] %v503
      %v505 = vld [vmem:[%s377] sm:$0xff]
      %v506 = vld [vmem:[#allocation2] sm:$0xff]
      %v507 = vpack.c.bf16 %v506, %v506
      %v508 = vpack.c.bf16 %v505, %v505
      %v509 = vld [vmem:[%s3] sm:$0xf]
      %v510 = vld [vmem:[%s3 + $0x4] sm:$0xf]
      %v511 = vld [vmem:[%s3 + $0x8] sm:$0xf]
      %v512 = vld [vmem:[%s3 + $0xc] sm:$0xf]
      %v513 = vld [vmem:[%s3 + $0x10] sm:$0xf]
      %v514 = vld [vmem:[%s3 + $0x14] sm:$0xf]
      %v515 = vld [vmem:[%s3 + $0x18] sm:$0xf]
      %v516 = vld [vmem:[%s3 + $0x1c] sm:$0xf]
      %v517 = vld [vmem:[%s3 + $0x20] sm:$0xf]
      %v518 = vld [vmem:[%s3 + $0x24] sm:$0xf]
      %v519 = vld [vmem:[%s3 + $0x28] sm:$0xf]
      %v520 = vld [vmem:[%s3 + $0x2c] sm:$0xf]
      %v521 = vld [vmem:[%s3 + $0x30] sm:$0xf]
      %v522 = vld [vmem:[%s3 + $0x34] sm:$0xf]
      %v523 = vld [vmem:[%s3 + $0x38] sm:$0xf]
      %v524 = vld [vmem:[%s3 + $0x3c] sm:$0xf]
      %v525 = vld [vmem:[%s3 + $0x40] sm:$0xf]
      %v526 = vld [vmem:[%s3 + $0x44] sm:$0xf]
      %v527 = vld [vmem:[%s3 + $0x48] sm:$0xf]
      %v528 = vld [vmem:[%s3 + $0x4c] sm:$0xf]
      %v529 = vld [vmem:[%s3 + $0x50] sm:$0xf]
      %v530 = vld [vmem:[%s3 + $0x54] sm:$0xf]
      %v531 = vld [vmem:[%s3 + $0x58] sm:$0xf]
      %v532 = vld [vmem:[%s3 + $0x5c] sm:$0xf]
      %v533 = vld [vmem:[%s3 + $0x60] sm:$0xf]
      %v534 = vld [vmem:[%s3 + $0x64] sm:$0xf]
      %v535 = vld [vmem:[%s3 + $0x68] sm:$0xf]
      %v536 = vld [vmem:[%s3 + $0x6c] sm:$0xf]
      %v537 = vld [vmem:[%s3 + $0x70] sm:$0xf]
      %v538 = vld [vmem:[%s3 + $0x74] sm:$0xf]
      %v539 = vld [vmem:[%s3 + $0x78] sm:$0xf]
      %v540 = vld [vmem:[%s3 + $0x7c] sm:$0xf]
      %v541 = vld [vmem:[%s4] sm:$0x1]
      %v543 = vlaneseq
      %v544 = vshrl.u32 %v543, 7
      %v545 = vsub.s32 0, %v544
      %v546 = vrot.slane %v541, %v545
      %v580 = vunpack.c.l.b16 %v509
      %v581 = vunpack.c.l.b16 %v510
      %v582 = vunpack.c.l.b16 %v511
      %v583 = vunpack.c.l.b16 %v512
      %v584 = vunpack.c.l.b16 %v513
      %v585 = vunpack.c.l.b16 %v514
      %v586 = vunpack.c.l.b16 %v515
      %v587 = vunpack.c.l.b16 %v516
      %v588 = vunpack.c.l.b16 %v517
      %v589 = vunpack.c.l.b16 %v518
      %v590 = vunpack.c.l.b16 %v519
      %v591 = vunpack.c.l.b16 %v520
      %v592 = vunpack.c.l.b16 %v521
      %v593 = vunpack.c.l.b16 %v522
      %v594 = vunpack.c.l.b16 %v523
      %v595 = vunpack.c.l.b16 %v524
      %v596 = vunpack.c.l.b16 %v525
      %v597 = vunpack.c.l.b16 %v526
      %v598 = vunpack.c.l.b16 %v527
      %v599 = vunpack.c.l.b16 %v528
      %v600 = vunpack.c.l.b16 %v529
      %v601 = vunpack.c.l.b16 %v530
      %v602 = vunpack.c.l.b16 %v531
      %v603 = vunpack.c.l.b16 %v532
      %v604 = vunpack.c.l.b16 %v533
      %v605 = vunpack.c.l.b16 %v534
      %v606 = vunpack.c.l.b16 %v535
      %v607 = vunpack.c.l.b16 %v536
      %v608 = vunpack.c.l.b16 %v537
      %v609 = vunpack.c.l.b16 %v538
      %v610 = vunpack.c.l.b16 %v539
      %v611 = vunpack.c.l.b16 %v540
      %v612 = vpack.c.b16 %v581, %v580
      %v613 = vpack.c.b16 %v583, %v582
      %v614 = vpack.c.b16 %v585, %v584
      %v615 = vpack.c.b16 %v587, %v586
      %v616 = vpack.c.b16 %v589, %v588
      %v617 = vpack.c.b16 %v591, %v590
      %v618 = vpack.c.b16 %v593, %v592
      %v619 = vpack.c.b16 %v595, %v594
      %v620 = vpack.c.b16 %v597, %v596
      %v621 = vpack.c.b16 %v599, %v598
      %v622 = vpack.c.b16 %v601, %v600
      %v623 = vpack.c.b16 %v603, %v602
      %v624 = vpack.c.b16 %v605, %v604
      %v625 = vpack.c.b16 %v607, %v606
      %v626 = vpack.c.b16 %v609, %v608
      %v627 = vpack.c.b16 %v611, %v610
      %644 = vmatprep.subr.bf16.mxu0 0
      %645 = vmatpush1.bf16.msra.mxu0 %v619
      %646 = vmatprep.subr.bf16.mxu0 0
      %647 = vmatpush1.bf16.msra.mxu0 %v618
      %648 = vmatprep.subr.bf16.mxu0 0
      %649 = vmatpush1.bf16.msra.mxu0 %v617
      %650 = vmatprep.subr.bf16.mxu0 0
      %651 = vmatpush1.bf16.msra.mxu0 %v616
      %652 = vmatprep.subr.bf16.mxu0 0
      %653 = vmatpush1.bf16.msra.mxu0 %v615
      %654 = vmatprep.subr.bf16.mxu0 0
      %655 = vmatpush1.bf16.msra.mxu0 %v614
      %656 = vmatprep.subr.bf16.mxu0 0
      %657 = vmatpush1.bf16.msra.mxu0 %v613
      %658 = vmatprep.subr.bf16.mxu0 0
      %659 = vmatpush1.bf16.msra.mxu0 %v612
      %660 = vmatprep.subr.bf16.mxu0 0
      %661 = vmatpush2.bf16.msra.mxu0 %v627
      %662 = vmatprep.subr.bf16.mxu0 0
      %663 = vmatpush2.bf16.msra.mxu0 %v626
      %664 = vmatprep.subr.bf16.mxu0 0
      %665 = vmatpush2.bf16.msra.mxu0 %v625
      %666 = vmatprep.subr.bf16.mxu0 0
      %667 = vmatpush2.bf16.msra.mxu0 %v624
      %668 = vmatprep.subr.bf16.mxu0 0
      %669 = vmatpush2.bf16.msra.mxu0 %v623
      %670 = vmatprep.subr.bf16.mxu0 0
      %671 = vmatpush2.bf16.msra.mxu0 %v622
      %672 = vmatprep.subr.bf16.mxu0 0
      %673 = vmatpush2.bf16.msra.mxu0 %v621
      %674 = vmatprep.subr.bf16.mxu0 0
      %675 = vmatpush2.bf16.msra.mxu0 %v620
      %676 = vmatprep.mubr.bf16.mxu0 %v508
      %677 = vmatmul.mubr.bf16.gmra.mxu0 %v507
      %v678 = vpop.f32.mrf.mxu0
      %v679 = vadd.f32 %v546, %v678
      %v680 = vpop.f32.mrf.mxu0
      %v681 = vpop.f32.mrf.mxu0
      %v682 = vpop.f32.mrf.mxu0
      %683 = vdwg.mxu0
      %v684 = vld [vmem:[%s5] sm:$0xf]
      %v685 = vld [vmem:[%s5 + $0x4] sm:$0xf]
      %v686 = vld [vmem:[%s5 + $0x8] sm:$0xf]
      %v687 = vld [vmem:[%s5 + $0xc] sm:$0xf]
      %v688 = vld [vmem:[%s5 + $0x10] sm:$0xf]
      %v689 = vld [vmem:[%s5 + $0x14] sm:$0xf]
      %v690 = vld [vmem:[%s5 + $0x18] sm:$0xf]
      %v691 = vld [vmem:[%s5 + $0x1c] sm:$0xf]
      %v692 = vld [vmem:[%s5 + $0x20] sm:$0xf]
      %v693 = vld [vmem:[%s5 + $0x24] sm:$0xf]
      %v694 = vld [vmem:[%s5 + $0x28] sm:$0xf]
      %v695 = vld [vmem:[%s5 + $0x2c] sm:$0xf]
      %v696 = vld [vmem:[%s5 + $0x30] sm:$0xf]
      %v697 = vld [vmem:[%s5 + $0x34] sm:$0xf]
      %v698 = vld [vmem:[%s5 + $0x38] sm:$0xf]
      %v699 = vld [vmem:[%s5 + $0x3c] sm:$0xf]
      %v700 = vld [vmem:[%s6] sm:$0x1]
      %v701 = vld [vmem:[%s7] sm:$0xf]
      %v702 = vld [vmem:[%s7 + $0x4] sm:$0xf]
      %v703 = vld [vmem:[%s7 + $0x8] sm:$0xf]
      %v704 = vld [vmem:[%s7 + $0xc] sm:$0xf]
      %v705 = vld [vmem:[%s7 + $0x10] sm:$0xf]
      %v706 = vld [vmem:[%s7 + $0x14] sm:$0xf]
      %v707 = vld [vmem:[%s7 + $0x18] sm:$0xf]
      %v708 = vld [vmem:[%s7 + $0x1c] sm:$0xf]
      %v709 = vld [vmem:[%s7 + $0x20] sm:$0xf]
      %v710 = vld [vmem:[%s7 + $0x24] sm:$0xf]
      %v711 = vld [vmem:[%s7 + $0x28] sm:$0xf]
      %v712 = vld [vmem:[%s7 + $0x2c] sm:$0xf]
      %v713 = vld [vmem:[%s7 + $0x30] sm:$0xf]
      %v714 = vld [vmem:[%s7 + $0x34] sm:$0xf]
      %v715 = vld [vmem:[%s7 + $0x38] sm:$0xf]
      %v716 = vld [vmem:[%s7 + $0x3c] sm:$0xf]
      %v717 = vld [vmem:[%s8] sm:$0x1]
      %v718 = vld [vmem:[%s9] sm:$0x1]
      %v719 = vld [vmem:[%s10] sm:$0x1]
      %v720 = vmax.f32 %v679, 0.0
      %v721 = vpack.c.bf16 %v720, %v720
      %v723 = vlaneseq
      %v724 = vshrl.u32 %v723, 7
      %v725 = vsub.s32 0, %v724
      %v726 = vrot.slane %v700, %v725
      %v744 = vunpack.c.l.b16 %v684
      %v745 = vunpack.c.l.b16 %v685
      %v746 = vunpack.c.l.b16 %v686
      %v747 = vunpack.c.l.b16 %v687
      %v748 = vunpack.c.l.b16 %v688
      %v749 = vunpack.c.l.b16 %v689
      %v750 = vunpack.c.l.b16 %v690
      %v751 = vunpack.c.l.b16 %v691
      %v752 = vunpack.c.l.b16 %v692
      %v753 = vunpack.c.l.b16 %v693
      %v754 = vunpack.c.l.b16 %v694
      %v755 = vunpack.c.l.b16 %v695
      %v756 = vunpack.c.l.b16 %v696
      %v757 = vunpack.c.l.b16 %v697
      %v758 = vunpack.c.l.b16 %v698
      %v759 = vunpack.c.l.b16 %v699
      %v760 = vpack.c.b16 %v745, %v744
      %v761 = vpack.c.b16 %v747, %v746
      %v762 = vpack.c.b16 %v749, %v748
      %v763 = vpack.c.b16 %v751, %v750
      %v764 = vpack.c.b16 %v753, %v752
      %v765 = vpack.c.b16 %v755, %v754
      %v766 = vpack.c.b16 %v757, %v756
      %v767 = vpack.c.b16 %v759, %v758
      %776 = vmatprep.subr.bf16.mxu0 0
      %777 = vmatpush1.bf16.msra.mxu0 %v767
      %778 = vmatprep.subr.bf16.mxu0 0
      %779 = vmatpush1.bf16.msra.mxu0 %v766
      %780 = vmatprep.subr.bf16.mxu0 0
      %781 = vmatpush1.bf16.msra.mxu0 %v765
      %782 = vmatprep.subr.bf16.mxu0 0
      %783 = vmatpush1.bf16.msra.mxu0 %v764
      %784 = vmatprep.subr.bf16.mxu0 0
      %785 = vmatpush1.bf16.msra.mxu0 %v763
      %786 = vmatprep.subr.bf16.mxu0 0
      %787 = vmatpush1.bf16.msra.mxu0 %v762
      %788 = vmatprep.subr.bf16.mxu0 0
      %789 = vmatpush1.bf16.msra.mxu0 %v761
      %790 = vmatprep.subr.bf16.mxu0 0
      %791 = vmatpush1.bf16.msra.mxu0 %v760
      %792 = vmatprep.subr.bf16.mxu0 0
      %793 = vmatpush2.bf16.msra.mxu0 0
      %794 = vmatprep.subr.bf16.mxu0 0
      %795 = vmatpush2.bf16.msra.mxu0 0
      %796 = vmatprep.subr.bf16.mxu0 0
      %797 = vmatpush2.bf16.msra.mxu0 0
      %798 = vmatprep.subr.bf16.mxu0 0
      %799 = vmatpush2.bf16.msra.mxu0 0
      %800 = vmatprep.subr.bf16.mxu0 0
      %801 = vmatpush2.bf16.msra.mxu0 0
      %802 = vmatprep.subr.bf16.mxu0 0
      %803 = vmatpush2.bf16.msra.mxu0 0
      %804 = vmatprep.subr.bf16.mxu0 0
      %805 = vmatpush2.bf16.msra.mxu0 0
      %806 = vmatprep.subr.bf16.mxu0 0
      %807 = vmatpush2.bf16.msra.mxu0 0
      %808 = vmatprep.mubr.bf16.mxu0 0
      %809 = vmatmul.mubr.bf16.gmra.mxu0 %v721
      %v810 = vpop.f32.mrf.mxu0
      %v811 = vadd.f32 %v726, %v810
      %v812 = vpop.f32.mrf.mxu0
      %v813 = vpop.f32.mrf.mxu0
      %v814 = vpop.f32.mrf.mxu0
      %815 = vdwg.mxu0
      %v816 = vmax.f32 %v811, 0.0
      %v817 = vpack.c.bf16 %v816, %v816
      %v819 = vlaneseq
      %v820 = vshrl.u32 %v819, 7
      %v821 = vsub.s32 0, %v820
      %v822 = vrot.slane %v717, %v821
      %v840 = vunpack.c.l.b16 %v701
      %v841 = vunpack.c.l.b16 %v702
      %v842 = vunpack.c.l.b16 %v703
      %v843 = vunpack.c.l.b16 %v704
      %v844 = vunpack.c.l.b16 %v705
      %v845 = vunpack.c.l.b16 %v706
      %v846 = vunpack.c.l.b16 %v707
      %v847 = vunpack.c.l.b16 %v708
      %v848 = vunpack.c.l.b16 %v709
      %v849 = vunpack.c.l.b16 %v710
      %v850 = vunpack.c.l.b16 %v711
      %v851 = vunpack.c.l.b16 %v712
      %v852 = vunpack.c.l.b16 %v713
      %v853 = vunpack.c.l.b16 %v714
      %v854 = vunpack.c.l.b16 %v715
      %v855 = vunpack.c.l.b16 %v716
      %v856 = vpack.c.b16 %v841, %v840
      %v857 = vpack.c.b16 %v843, %v842
      %v858 = vpack.c.b16 %v845, %v844
      %v859 = vpack.c.b16 %v847, %v846
      %v860 = vpack.c.b16 %v849, %v848
      %v861 = vpack.c.b16 %v851, %v850
      %v862 = vpack.c.b16 %v853, %v852
      %v863 = vpack.c.b16 %v855, %v854
      %872 = vmatprep.subr.bf16.mxu0 0
      %873 = vmatpush1.bf16.msra.mxu0 %v863
      %874 = vmatprep.subr.bf16.mxu0 0
      %875 = vmatpush1.bf16.msra.mxu0 %v862
      %876 = vmatprep.subr.bf16.mxu0 0
      %877 = vmatpush1.bf16.msra.mxu0 %v861
      %878 = vmatprep.subr.bf16.mxu0 0
      %879 = vmatpush1.bf16.msra.mxu0 %v860
      %880 = vmatprep.subr.bf16.mxu0 0
      %881 = vmatpush1.bf16.msra.mxu0 %v859
      %882 = vmatprep.subr.bf16.mxu0 0
      %883 = vmatpush1.bf16.msra.mxu0 %v858
      %884 = vmatprep.subr.bf16.mxu0 0
      %885 = vmatpush1.bf16.msra.mxu0 %v857
      %886 = vmatprep.subr.bf16.mxu0 0
      %887 = vmatpush1.bf16.msra.mxu0 %v856
      %888 = vmatprep.subr.bf16.mxu0 0
      %889 = vmatpush2.bf16.msra.mxu0 0
      %890 = vmatprep.subr.bf16.mxu0 0
      %891 = vmatpush2.bf16.msra.mxu0 0
      %892 = vmatprep.subr.bf16.mxu0 0
      %893 = vmatpush2.bf16.msra.mxu0 0
      %894 = vmatprep.subr.bf16.mxu0 0
      %895 = vmatpush2.bf16.msra.mxu0 0
      %896 = vmatprep.subr.bf16.mxu0 0
      %897 = vmatpush2.bf16.msra.mxu0 0
      %898 = vmatprep.subr.bf16.mxu0 0
      %899 = vmatpush2.bf16.msra.mxu0 0
      %900 = vmatprep.subr.bf16.mxu0 0
      %901 = vmatpush2.bf16.msra.mxu0 0
      %902 = vmatprep.subr.bf16.mxu0 0
      %903 = vmatpush2.bf16.msra.mxu0 0
      %904 = vmatprep.mubr.bf16.mxu0 0
      %905 = vmatmul.mubr.bf16.gmra.mxu0 %v817
      %v906 = vpop.f32.mrf.mxu0
      %v907 = vadd.f32 %v822, %v906
      %v908 = vpop.f32.mrf.mxu0
      %v909 = vpop.f32.mrf.mxu0
      %v910 = vpop.f32.mrf.mxu0
      %911 = vdwg.mxu0
      %912 = vadd.xlane.f32.xlu0 %v907
      %v913 = vpop.xlane.xlu0 %912
      %v914 = vrcp.pop 128.0
      %v915 = vmul.f32 %v913, %v914
      %v916 = vsub.f32 %v907, %v915
      %v917 = vmul.f32 %v916, %v916
      %918 = vadd.xlane.f32.xlu0 %v917
      %v919 = vpop.xlane.xlu0 %918
      %v920 = vmul.f32 %v919, %v914
      %v921 = vadd.f32 %v920, 1e-05
      %v922 = vrsqrt.pop %v921
      %v923 = vmul.f32 %v916, %v922
      %v925 = vlaneseq
      %v926 = vshrl.u32 %v925, 7
      %v927 = vsub.s32 0, %v926
      %v928 = vrot.slane %v718, %v927
      %v930 = vmul.f32 %v923, %v928
      %v932 = vlaneseq
      %v933 = vshrl.u32 %v932, 7
      %v934 = vsub.s32 0, %v933
      %v935 = vrot.slane %v719, %v934
      %v937 = vadd.f32 %v930, %v935
      %v938 = vadd.f32 %v505, %v937
      %939 = vst [vmem:[%s381] sm:$0xff] %v938
      %p940 = scmp.lt.s32.totalorder %s22, 1
      %s941 = scalar_select %p940, %s22, 1
      %s942 = smul.addr %s941, 8
      %s943 = scalar_lea.vmem %s11, %s942
      // Predicated region
      $region65: #{processor_forward.5} parent=63 // pred_check
        %p944 = pneg %p276
      $region66: #{processor_forward.5} parent=63 // pred_check_branch
        %946 = sbr.rel (%p944) target = $region68
      $region67: #{processor_forward.5} parent=63 // pred_region
        _
      $region68: #{processor_forward.5} parent=63 // pred_fallthru
        _
    $region64: #{processor_forward.5} parent=5 // pred_fallthru
      _
    %p947 = scmp.le.s32.totalorder 2, %s17
    // Predicated region
    $region69: #{processor_forward.5} parent=5 // pred_check
      %p948 = pneg %p947
    $region70: #{processor_forward.5} parent=5 // pred_check_branch
      %950 = sbr.rel (%p948) target = $region72
    $region71: #{processor_forward.5} parent=5 // pred_region
      %s951 = ssub.s32 %s17, 2
      // Predicated region
      $region73: #{processor_forward.5} parent=71 // pred_check
        %p952 = pneg %p282
      $region74: #{processor_forward.5} parent=71 // pred_check_branch
        %954 = sbr.rel (%p952) target = $region76
      $region75: #{processor_forward.5} parent=71 // pred_region
        %p955 = scmp.lt.s32.totalorder %s23, 1
        %s956 = scalar_select %p955, %s23, 1
        %s957 = smul.addr %s956, 8
        %s958 = scalar_lea.vmem %s11, %s957
      $region76: #{processor_forward.5} parent=71 // pred_fallthru
        _
    $region72: #{processor_forward.5} parent=5 // pred_fallthru
      _
  $region6: #{processor_forward.5} parent=0 // loop_footer
    %s21 = sadd.s32 1, %s17
  $region7: #{processor_forward.5} parent=0 // loop_footer_branch
    %16 = sbr.rel target = $region3
  $region8: #{processor_forward.5} parent=0 // loop_exit
    _

// kernel: processor_forward.4
$region0: #{processor_forward.4}
  #allocation0 [shape = 'u32[]', space=smem, size = 0x4, offset = 0x4, fixed_abs, tag = 'smem constant byte address 0x4 - core index']
  #allocation1 [shape = 'u32[144,128]{1,0:T(1,128)}', space=vmem, size = 0x12000, scoped, tag = 'internal scratch']
  %s0 = inlined_call_operand.vmem [shape: f32[128,128], index: 0, kind: input, shape index: {}, may-alias: {0,12}]
  %s1 = inlined_call_operand.vmem [shape: bf16[128,128], index: 1, kind: input, shape index: {}]
  %s2 = inlined_call_operand.vmem [shape: bf16[128,128], index: 2, kind: input, shape index: {}]
  %s3 = inlined_call_operand.vmem [shape: bf16[384,128], index: 3, kind: input, shape index: {}]
  %s4 = inlined_call_operand.vmem [shape: f32[1,128], index: 4, kind: input, shape index: {}]
  %s5 = inlined_call_operand.vmem [shape: bf16[128,128], index: 5, kind: input, shape index: {}]
  %s6 = inlined_call_operand.vmem [shape: f32[1,128], index: 6, kind: input, shape index: {}]
  %s7 = inlined_call_operand.vmem [shape: bf16[128,128], index: 7, kind: input, shape index: {}]
  %s8 = inlined_call_operand.vmem [shape: f32[1,128], index: 8, kind: input, shape index: {}]
  %s9 = inlined_call_operand.vmem [shape: f32[1,128], index: 9, kind: input, shape index: {}]
  %s10 = inlined_call_operand.vmem [shape: f32[1,128], index: 10, kind: input, shape index: {}]
  %s11 = inlined_call_operand.vmem [shape: bf16[128,128], index: 11, kind: output, shape index: {0}]
  %s12 = inlined_call_operand.vmem [shape: f32[128,128], index: 12, kind: output, shape index: {1}, may-alias: {0,12}]
  %13 = xla_tuple %s11, %s12
  %s14 = sld [smem:[#allocation0]]
  $region62: #{processor_forward.4} parent=0
    _
  %s16 = ssub.s32 1, %s14
  %s17 = scalar_select 0, %s16, %s14
  // Predicated region
  $region2: #{processor_forward.4} parent=0 // pred_check
    _
  $region3: #{processor_forward.4} parent=0 // pred_check_branch
    %19 = sbr.rel (0) target = $region5
  $region4: #{processor_forward.4} parent=0 // pred_region
    _
  $region5: #{processor_forward.4} parent=0 // pred_fallthru
    _
  // Predicated region
  $region6: #{processor_forward.4} parent=0 // pred_check
    _
  $region7: #{processor_forward.4} parent=0 // pred_check_branch
    %21 = sbr.rel (0) target = $region9
  $region8: #{processor_forward.4} parent=0 // pred_region
    _
  $region9: #{processor_forward.4} parent=0 // pred_fallthru
    _
  // Predicated region
  $region10: #{processor_forward.4} parent=0 // pred_check
    _
  $region11: #{processor_forward.4} parent=0 // pred_check_branch
    %23 = sbr.rel (0) target = $region13
  $region12: #{processor_forward.4} parent=0 // pred_region
    _
  $region13: #{processor_forward.4} parent=0 // pred_fallthru
    _
  // Predicated region
  $region14: #{processor_forward.4} parent=0 // pred_check
    _
  $region15: #{processor_forward.4} parent=0 // pred_check_branch
    %25 = sbr.rel (0) target = $region17
  $region16: #{processor_forward.4} parent=0 // pred_region
    _
  $region17: #{processor_forward.4} parent=0 // pred_fallthru
    _
  // Predicated region
  $region18: #{processor_forward.4} parent=0 // pred_check
    _
  $region19: #{processor_forward.4} parent=0 // pred_check_branch
    %27 = sbr.rel (0) target = $region21
  $region20: #{processor_forward.4} parent=0 // pred_region
    _
  $region21: #{processor_forward.4} parent=0 // pred_fallthru
    _
  // Predicated region
  $region22: #{processor_forward.4} parent=0 // pred_check
    _
  $region23: #{processor_forward.4} parent=0 // pred_check_branch
    %29 = sbr.rel (0) target = $region25
  $region24: #{processor_forward.4} parent=0 // pred_region
    _
  $region25: #{processor_forward.4} parent=0 // pred_fallthru
    _
  // Predicated region
  $region26: #{processor_forward.4} parent=0 // pred_check
    _
  $region27: #{processor_forward.4} parent=0 // pred_check_branch
    %31 = sbr.rel (0) target = $region29
  $region28: #{processor_forward.4} parent=0 // pred_region
    _
  $region29: #{processor_forward.4} parent=0 // pred_fallthru
    _
  // Predicated region
  $region30: #{processor_forward.4} parent=0 // pred_check
    _
  $region31: #{processor_forward.4} parent=0 // pred_check_branch
    %33 = sbr.rel (0) target = $region33
  $region32: #{processor_forward.4} parent=0 // pred_region
    _
  $region33: #{processor_forward.4} parent=0 // pred_fallthru
    _
  // Predicated region
  $region34: #{processor_forward.4} parent=0 // pred_check
    _
  $region35: #{processor_forward.4} parent=0 // pred_check_branch
    %35 = sbr.rel (0) target = $region37
  $region36: #{processor_forward.4} parent=0 // pred_region
    _
  $region37: #{processor_forward.4} parent=0 // pred_fallthru
    _
  // Predicated region
  $region38: #{processor_forward.4} parent=0 // pred_check
    _
  $region39: #{processor_forward.4} parent=0 // pred_check_branch
    %37 = sbr.rel (0) target = $region41
  $region40: #{processor_forward.4} parent=0 // pred_region
    _
  $region41: #{processor_forward.4} parent=0 // pred_fallthru
    _
  // Predicated region
  $region42: #{processor_forward.4} parent=0 // pred_check
    _
  $region43: #{processor_forward.4} parent=0 // pred_check_branch
    %39 = sbr.rel (0) target = $region45
  $region44: #{processor_forward.4} parent=0 // pred_region
    _
  $region45: #{processor_forward.4} parent=0 // pred_fallthru
    _
  %v41 = vld [vmem:[%s0] sm:$0xff]
  %v42 = vld [vmem:[%s0 + $0x8] sm:$0xff]
  %v43 = vld [vmem:[%s0 + $0x10] sm:$0xff]
  %v44 = vld [vmem:[%s0 + $0x18] sm:$0xff]
  %v45 = vld [vmem:[%s0 + $0x20] sm:$0xff]
  %v46 = vld [vmem:[%s0 + $0x28] sm:$0xff]
  %v47 = vld [vmem:[%s0 + $0x30] sm:$0xff]
  %v48 = vld [vmem:[%s0 + $0x38] sm:$0xff]
  %v49 = vld [vmem:[%s0 + $0x40] sm:$0xff]
  %v50 = vld [vmem:[%s0 + $0x48] sm:$0xff]
  %v51 = vld [vmem:[%s0 + $0x50] sm:$0xff]
  %v52 = vld [vmem:[%s0 + $0x58] sm:$0xff]
  %v53 = vld [vmem:[%s0 + $0x60] sm:$0xff]
  %v54 = vld [vmem:[%s0 + $0x68] sm:$0xff]
  %v55 = vld [vmem:[%s0 + $0x70] sm:$0xff]
  %v56 = vld [vmem:[%s0 + $0x78] sm:$0xff]
  %v57 = vpack.c.bf16 %v42, %v41
  %v58 = vpack.c.bf16 %v44, %v43
  %v59 = vpack.c.bf16 %v46, %v45
  %v60 = vpack.c.bf16 %v48, %v47
  %v61 = vpack.c.bf16 %v50, %v49
  %v62 = vpack.c.bf16 %v52, %v51
  %v63 = vpack.c.bf16 %v54, %v53
  %v64 = vpack.c.bf16 %v56, %v55
  %v65 = vld [vmem:[%s1] sm:$0xf]
  %v66 = vld [vmem:[%s1 + $0x4] sm:$0xf]
  %v67 = vld [vmem:[%s1 + $0x8] sm:$0xf]
  %v68 = vld [vmem:[%s1 + $0xc] sm:$0xf]
  %v69 = vld [vmem:[%s1 + $0x10] sm:$0xf]
  %v70 = vld [vmem:[%s1 + $0x14] sm:$0xf]
  %v71 = vld [vmem:[%s1 + $0x18] sm:$0xf]
  %v72 = vld [vmem:[%s1 + $0x1c] sm:$0xf]
  %v73 = vld [vmem:[%s1 + $0x20] sm:$0xf]
  %v74 = vld [vmem:[%s1 + $0x24] sm:$0xf]
  %v75 = vld [vmem:[%s1 + $0x28] sm:$0xf]
  %v76 = vld [vmem:[%s1 + $0x2c] sm:$0xf]
  %v77 = vld [vmem:[%s1 + $0x30] sm:$0xf]
  %v78 = vld [vmem:[%s1 + $0x34] sm:$0xf]
  %v79 = vld [vmem:[%s1 + $0x38] sm:$0xf]
  %v80 = vld [vmem:[%s1 + $0x3c] sm:$0xf]
  %v81 = vld [vmem:[%s2] sm:$0xf]
  %v82 = vld [vmem:[%s2 + $0x4] sm:$0xf]
  %v83 = vld [vmem:[%s2 + $0x8] sm:$0xf]
  %v84 = vld [vmem:[%s2 + $0xc] sm:$0xf]
  %v85 = vld [vmem:[%s2 + $0x10] sm:$0xf]
  %v86 = vld [vmem:[%s2 + $0x14] sm:$0xf]
  %v87 = vld [vmem:[%s2 + $0x18] sm:$0xf]
  %v88 = vld [vmem:[%s2 + $0x1c] sm:$0xf]
  %v89 = vld [vmem:[%s2 + $0x20] sm:$0xf]
  %v90 = vld [vmem:[%s2 + $0x24] sm:$0xf]
  %v91 = vld [vmem:[%s2 + $0x28] sm:$0xf]
  %v92 = vld [vmem:[%s2 + $0x2c] sm:$0xf]
  %v93 = vld [vmem:[%s2 + $0x30] sm:$0xf]
  %v94 = vld [vmem:[%s2 + $0x34] sm:$0xf]
  %v95 = vld [vmem:[%s2 + $0x38] sm:$0xf]
  %v96 = vld [vmem:[%s2 + $0x3c] sm:$0xf]
  %v113 = vunpack.c.l.b16 %v65
  %v114 = vunpack.c.l.b16 %v66
  %v115 = vunpack.c.l.b16 %v67
  %v116 = vunpack.c.l.b16 %v68
  %v117 = vunpack.c.l.b16 %v69
  %v118 = vunpack.c.l.b16 %v70
  %v119 = vunpack.c.l.b16 %v71
  %v120 = vunpack.c.l.b16 %v72
  %v121 = vunpack.c.l.b16 %v73
  %v122 = vunpack.c.l.b16 %v74
  %v123 = vunpack.c.l.b16 %v75
  %v124 = vunpack.c.l.b16 %v76
  %v125 = vunpack.c.l.b16 %v77
  %v126 = vunpack.c.l.b16 %v78
  %v127 = vunpack.c.l.b16 %v79
  %v128 = vunpack.c.l.b16 %v80
  %v129 = vpack.c.b16 %v114, %v113
  %v130 = vpack.c.b16 %v116, %v115
  %v131 = vpack.c.b16 %v118, %v117
  %v132 = vpack.c.b16 %v120, %v119
  %v133 = vpack.c.b16 %v122, %v121
  %v134 = vpack.c.b16 %v124, %v123
  %v135 = vpack.c.b16 %v126, %v125
  %v136 = vpack.c.b16 %v128, %v127
  %v161 = vunpack.c.l.b16 %v81
  %v162 = vunpack.c.l.b16 %v82
  %v163 = vunpack.c.l.b16 %v83
  %v164 = vunpack.c.l.b16 %v84
  %v165 = vunpack.c.l.b16 %v85
  %v166 = vunpack.c.l.b16 %v86
  %v167 = vunpack.c.l.b16 %v87
  %v168 = vunpack.c.l.b16 %v88
  %v169 = vunpack.c.l.b16 %v89
  %v170 = vunpack.c.l.b16 %v90
  %v171 = vunpack.c.l.b16 %v91
  %v172 = vunpack.c.l.b16 %v92
  %v173 = vunpack.c.l.b16 %v93
  %v174 = vunpack.c.l.b16 %v94
  %v175 = vunpack.c.l.b16 %v95
  %v176 = vunpack.c.l.b16 %v96
  %v177 = vpack.c.b16 %v162, %v161
  %v178 = vpack.c.b16 %v164, %v163
  %v179 = vpack.c.b16 %v166, %v165
  %v180 = vpack.c.b16 %v168, %v167
  %v181 = vpack.c.b16 %v170, %v169
  %v182 = vpack.c.b16 %v172, %v171
  %v183 = vpack.c.b16 %v174, %v173
  %v184 = vpack.c.b16 %v176, %v175
  %v193 = vld [vmem:[%s3] sm:$0xf]
  %v194 = vld [vmem:[%s3 + $0x4] sm:$0xf]
  %v195 = vld [vmem:[%s3 + $0x8] sm:$0xf]
  %v196 = vld [vmem:[%s3 + $0xc] sm:$0xf]
  %v197 = vld [vmem:[%s3 + $0x10] sm:$0xf]
  %v198 = vld [vmem:[%s3 + $0x14] sm:$0xf]
  %v199 = vld [vmem:[%s3 + $0x18] sm:$0xf]
  %v200 = vld [vmem:[%s3 + $0x1c] sm:$0xf]
  %v201 = vld [vmem:[%s3 + $0x20] sm:$0xf]
  %v202 = vld [vmem:[%s3 + $0x24] sm:$0xf]
  %v203 = vld [vmem:[%s3 + $0x28] sm:$0xf]
  %v204 = vld [vmem:[%s3 + $0x2c] sm:$0xf]
  %v205 = vld [vmem:[%s3 + $0x30] sm:$0xf]
  %v206 = vld [vmem:[%s3 + $0x34] sm:$0xf]
  %v207 = vld [vmem:[%s3 + $0x38] sm:$0xf]
  %v208 = vld [vmem:[%s3 + $0x3c] sm:$0xf]
  %v209 = vld [vmem:[%s3 + $0x40] sm:$0xf]
  %v210 = vld [vmem:[%s3 + $0x44] sm:$0xf]
  %v211 = vld [vmem:[%s3 + $0x48] sm:$0xf]
  %v212 = vld [vmem:[%s3 + $0x4c] sm:$0xf]
  %v213 = vld [vmem:[%s3 + $0x50] sm:$0xf]
  %v214 = vld [vmem:[%s3 + $0x54] sm:$0xf]
  %v215 = vld [vmem:[%s3 + $0x58] sm:$0xf]
  %v216 = vld [vmem:[%s3 + $0x5c] sm:$0xf]
  %v217 = vld [vmem:[%s3 + $0x60] sm:$0xf]
  %v218 = vld [vmem:[%s3 + $0x64] sm:$0xf]
  %v219 = vld [vmem:[%s3 + $0x68] sm:$0xf]
  %v220 = vld [vmem:[%s3 + $0x6c] sm:$0xf]
  %v221 = vld [vmem:[%s3 + $0x70] sm:$0xf]
  %v222 = vld [vmem:[%s3 + $0x74] sm:$0xf]
  %v223 = vld [vmem:[%s3 + $0x78] sm:$0xf]
  %v224 = vld [vmem:[%s3 + $0x7c] sm:$0xf]
  %v225 = vld [vmem:[%s3 + $0x80] sm:$0xf]
  %v226 = vld [vmem:[%s3 + $0x84] sm:$0xf]
  %v227 = vld [vmem:[%s3 + $0x88] sm:$0xf]
  %v228 = vld [vmem:[%s3 + $0x8c] sm:$0xf]
  %v229 = vld [vmem:[%s3 + $0x90] sm:$0xf]
  %v230 = vld [vmem:[%s3 + $0x94] sm:$0xf]
  %v231 = vld [vmem:[%s3 + $0x98] sm:$0xf]
  %v232 = vld [vmem:[%s3 + $0x9c] sm:$0xf]
  %v233 = vld [vmem:[%s3 + $0xa0] sm:$0xf]
  %v234 = vld [vmem:[%s3 + $0xa4] sm:$0xf]
  %v235 = vld [vmem:[%s3 + $0xa8] sm:$0xf]
  %v236 = vld [vmem:[%s3 + $0xac] sm:$0xf]
  %v237 = vld [vmem:[%s3 + $0xb0] sm:$0xf]
  %v238 = vld [vmem:[%s3 + $0xb4] sm:$0xf]
  %v239 = vld [vmem:[%s3 + $0xb8] sm:$0xf]
  %v240 = vld [vmem:[%s3 + $0xbc] sm:$0xf]
  %v241 = vld [vmem:[%s4] sm:$0x1]
  %v243 = vlaneseq
  %v244 = vshrl.u32 %v243, 7
  %v245 = vsub.s32 0, %v244
  %v246 = vrot.slane %v241, %v245
  %v296 = vunpack.c.l.b16 %v193
  %v297 = vunpack.c.l.b16 %v194
  %v298 = vunpack.c.l.b16 %v195
  %v299 = vunpack.c.l.b16 %v196
  %v300 = vunpack.c.l.b16 %v197
  %v301 = vunpack.c.l.b16 %v198
  %v302 = vunpack.c.l.b16 %v199
  %v303 = vunpack.c.l.b16 %v200
  %v304 = vunpack.c.l.b16 %v201
  %v305 = vunpack.c.l.b16 %v202
  %v306 = vunpack.c.l.b16 %v203
  %v307 = vunpack.c.l.b16 %v204
  %v308 = vunpack.c.l.b16 %v205
  %v309 = vunpack.c.l.b16 %v206
  %v310 = vunpack.c.l.b16 %v207
  %v311 = vunpack.c.l.b16 %v208
  %v312 = vunpack.c.l.b16 %v209
  %v313 = vunpack.c.l.b16 %v210
  %v314 = vunpack.c.l.b16 %v211
  %v315 = vunpack.c.l.b16 %v212
  %v316 = vunpack.c.l.b16 %v213
  %v317 = vunpack.c.l.b16 %v214
  %v318 = vunpack.c.l.b16 %v215
  %v319 = vunpack.c.l.b16 %v216
  %v320 = vunpack.c.l.b16 %v217
  %v321 = vunpack.c.l.b16 %v218
  %v322 = vunpack.c.l.b16 %v219
  %v323 = vunpack.c.l.b16 %v220
  %v324 = vunpack.c.l.b16 %v221
  %v325 = vunpack.c.l.b16 %v222
  %v326 = vunpack.c.l.b16 %v223
  %v327 = vunpack.c.l.b16 %v224
  %v328 = vunpack.c.l.b16 %v225
  %v329 = vunpack.c.l.b16 %v226
  %v330 = vunpack.c.l.b16 %v227
  %v331 = vunpack.c.l.b16 %v228
  %v332 = vunpack.c.l.b16 %v229
  %v333 = vunpack.c.l.b16 %v230
  %v334 = vunpack.c.l.b16 %v231
  %v335 = vunpack.c.l.b16 %v232
  %v336 = vunpack.c.l.b16 %v233
  %v337 = vunpack.c.l.b16 %v234
  %v338 = vunpack.c.l.b16 %v235
  %v339 = vunpack.c.l.b16 %v236
  %v340 = vunpack.c.l.b16 %v237
  %v341 = vunpack.c.l.b16 %v238
  %v342 = vunpack.c.l.b16 %v239
  %v343 = vunpack.c.l.b16 %v240
  %v344 = vpack.c.b16 %v297, %v296
  %v345 = vpack.c.b16 %v299, %v298
  %v346 = vpack.c.b16 %v301, %v300
  %v347 = vpack.c.b16 %v303, %v302
  %v348 = vpack.c.b16 %v305, %v304
  %v349 = vpack.c.b16 %v307, %v306
  %v350 = vpack.c.b16 %v309, %v308
  %v351 = vpack.c.b16 %v311, %v310
  %v352 = vpack.c.b16 %v313, %v312
  %v353 = vpack.c.b16 %v315, %v314
  %v354 = vpack.c.b16 %v317, %v316
  %v355 = vpack.c.b16 %v319, %v318
  %v356 = vpack.c.b16 %v321, %v320
  %v357 = vpack.c.b16 %v323, %v322
  %v358 = vpack.c.b16 %v325, %v324
  %v359 = vpack.c.b16 %v327, %v326
  %v360 = vpack.c.b16 %v329, %v328
  %v361 = vpack.c.b16 %v331, %v330
  %v362 = vpack.c.b16 %v333, %v332
  %v363 = vpack.c.b16 %v335, %v334
  %v364 = vpack.c.b16 %v337, %v336
  %v365 = vpack.c.b16 %v339, %v338
  %v366 = vpack.c.b16 %v341, %v340
  %v367 = vpack.c.b16 %v343, %v342
  %392 = vmatprep.subr.bf16.mxu0 0
  %393 = vmatpush1.bf16.msra.mxu0 %v351
  %394 = vmatprep.subr.bf16.mxu0 0
  %395 = vmatpush1.bf16.msra.mxu0 %v350
  %396 = vmatprep.subr.bf16.mxu0 0
  %397 = vmatpush1.bf16.msra.mxu0 %v349
  %398 = vmatprep.subr.bf16.mxu0 0
  %399 = vmatpush1.bf16.msra.mxu0 %v348
  %400 = vmatprep.subr.bf16.mxu0 0
  %401 = vmatpush1.bf16.msra.mxu0 %v347
  %402 = vmatprep.subr.bf16.mxu0 0
  %403 = vmatpush1.bf16.msra.mxu0 %v346
  %404 = vmatprep.subr.bf16.mxu0 0
  %405 = vmatpush1.bf16.msra.mxu0 %v345
  %406 = vmatprep.subr.bf16.mxu0 0
  %407 = vmatpush1.bf16.msra.mxu0 %v344
  %408 = vmatprep.subr.bf16.mxu0 0
  %409 = vmatpush2.bf16.msra.mxu0 %v359
  %410 = vmatprep.subr.bf16.mxu0 0
  %411 = vmatpush2.bf16.msra.mxu0 %v358
  %412 = vmatprep.subr.bf16.mxu0 0
  %413 = vmatpush2.bf16.msra.mxu0 %v357
  %414 = vmatprep.subr.bf16.mxu0 0
  %415 = vmatpush2.bf16.msra.mxu0 %v356
  %416 = vmatprep.subr.bf16.mxu0 0
  %417 = vmatpush2.bf16.msra.mxu0 %v355
  %418 = vmatprep.subr.bf16.mxu0 0
  %419 = vmatpush2.bf16.msra.mxu0 %v354
  %420 = vmatprep.subr.bf16.mxu0 0
  %421 = vmatpush2.bf16.msra.mxu0 %v353
  %422 = vmatprep.subr.bf16.mxu0 0
  %423 = vmatpush2.bf16.msra.mxu0 %v352
  %424 = vmatprep.mubr.bf16.mxu0 %v129
  %425 = vmatmul.mubr.bf16.gmra.mxu0 %v57
  %v426 = vpop.f32.mrf.mxu0
  %v427 = vadd.f32 %v246, %v426
  %v428 = vpop.f32.mrf.mxu0
  %v429 = vpop.f32.mrf.mxu0
  %v430 = vadd.f32 %v246, %v429
  %v431 = vpop.f32.mrf.mxu0
  %432 = vmatprep.mubr.bf16.mxu0 %v130
  %433 = vmatmul.mubr.bf16.gmra.mxu0 %v58
  %v434 = vpop.f32.mrf.mxu0
  %v435 = vadd.f32 %v246, %v434
  %v436 = vpop.f32.mrf.mxu0
  %v437 = vpop.f32.mrf.mxu0
  %v438 = vadd.f32 %v246, %v437
  %v439 = vpop.f32.mrf.mxu0
  %440 = vmatprep.mubr.bf16.mxu0 %v131
  %441 = vmatmul.mubr.bf16.gmra.mxu0 %v59
  %v442 = vpop.f32.mrf.mxu0
  %v443 = vadd.f32 %v246, %v442
  %v444 = vpop.f32.mrf.mxu0
  %v445 = vpop.f32.mrf.mxu0
  %v446 = vadd.f32 %v246, %v445
  %v447 = vpop.f32.mrf.mxu0
  %448 = vmatprep.mubr.bf16.mxu0 %v132
  %449 = vmatmul.mubr.bf16.gmra.mxu0 %v60
  %v450 = vpop.f32.mrf.mxu0
  %v451 = vadd.f32 %v246, %v450
  %v452 = vpop.f32.mrf.mxu0
  %v453 = vpop.f32.mrf.mxu0
  %v454 = vadd.f32 %v246, %v453
  %v455 = vpop.f32.mrf.mxu0
  %456 = vmatprep.mubr.bf16.mxu0 %v133
  %457 = vmatmul.mubr.bf16.gmra.mxu0 %v61
  %v458 = vpop.f32.mrf.mxu0
  %v459 = vadd.f32 %v246, %v458
  %v460 = vpop.f32.mrf.mxu0
  %v461 = vpop.f32.mrf.mxu0
  %v462 = vadd.f32 %v246, %v461
  %v463 = vpop.f32.mrf.mxu0
  %464 = vmatprep.mubr.bf16.mxu0 %v134
  %465 = vmatmul.mubr.bf16.gmra.mxu0 %v62
  %v466 = vpop.f32.mrf.mxu0
  %v467 = vadd.f32 %v246, %v466
  %v468 = vpop.f32.mrf.mxu0
  %v469 = vpop.f32.mrf.mxu0
  %v470 = vadd.f32 %v246, %v469
  %v471 = vpop.f32.mrf.mxu0
  %472 = vmatprep.mubr.bf16.mxu0 %v135
  %473 = vmatmul.mubr.bf16.gmra.mxu0 %v63
  %v474 = vpop.f32.mrf.mxu0
  %v475 = vadd.f32 %v246, %v474
  %v476 = vpop.f32.mrf.mxu0
  %v477 = vpop.f32.mrf.mxu0
  %v478 = vadd.f32 %v246, %v477
  %v479 = vpop.f32.mrf.mxu0
  %480 = vmatprep.mubr.bf16.mxu0 %v136
  %481 = vmatmul.mubr.bf16.gmra.mxu0 %v64
  %v482 = vpop.f32.mrf.mxu0
  %v483 = vadd.f32 %v246, %v482
  %v484 = vpop.f32.mrf.mxu0
  %v485 = vpop.f32.mrf.mxu0
  %v486 = vadd.f32 %v246, %v485
  %v487 = vpop.f32.mrf.mxu0
  %488 = vdwg.mxu0
  %489 = vmatprep.subr.bf16.mxu0 0
  %490 = vmatpush1.bf16.msra.mxu0 %v367
  %491 = vmatprep.subr.bf16.mxu0 0
  %492 = vmatpush1.bf16.msra.mxu0 %v366
  %493 = vmatprep.subr.bf16.mxu0 0
  %494 = vmatpush1.bf16.msra.mxu0 %v365
  %495 = vmatprep.subr.bf16.mxu0 0
  %496 = vmatpush1.bf16.msra.mxu0 %v364
  %497 = vmatprep.subr.bf16.mxu0 0
  %498 = vmatpush1.bf16.msra.mxu0 %v363
  %499 = vmatprep.subr.bf16.mxu0 0
  %500 = vmatpush1.bf16.msra.mxu0 %v362
  %501 = vmatprep.subr.bf16.mxu0 0
  %502 = vmatpush1.bf16.msra.mxu0 %v361
  %503 = vmatprep.subr.bf16.mxu0 0
  %504 = vmatpush1.bf16.msra.mxu0 %v360
  %505 = vmatprep.subr.bf16.mxu0 0
  %506 = vmatpush2.bf16.msra.mxu0 0
  %507 = vmatprep.subr.bf16.mxu0 0
  %508 = vmatpush2.bf16.msra.mxu0 0
  %509 = vmatprep.subr.bf16.mxu0 0
  %510 = vmatpush2.bf16.msra.mxu0 0
  %511 = vmatprep.subr.bf16.mxu0 0
  %512 = vmatpush2.bf16.msra.mxu0 0
  %513 = vmatprep.subr.bf16.mxu0 0
  %514 = vmatpush2.bf16.msra.mxu0 0
  %515 = vmatprep.subr.bf16.mxu0 0
  %516 = vmatpush2.bf16.msra.mxu0 0
  %517 = vmatprep.subr.bf16.mxu0 0
  %518 = vmatpush2.bf16.msra.mxu0 0
  %519 = vmatprep.subr.bf16.mxu0 0
  %520 = vmatpush2.bf16.msra.mxu0 0
  %521 = vmatprep.mubr.bf16.mxu0 0
  %522 = vmatmul.mubr.bf16.gmra.mxu0 %v177
  %v523 = vpop.f32.mrf.mxu0
  %v524 = vadd.f32 %v427, %v523
  %v525 = vpop.f32.mrf.mxu0
  %v526 = vpop.f32.mrf.mxu0
  %v527 = vadd.f32 %v430, %v526
  %v528 = vpop.f32.mrf.mxu0
  %529 = vmatprep.mubr.bf16.mxu0 0
  %530 = vmatmul.mubr.bf16.gmra.mxu0 %v178
  %v531 = vpop.f32.mrf.mxu0
  %v532 = vadd.f32 %v435, %v531
  %v533 = vpop.f32.mrf.mxu0
  %v534 = vpop.f32.mrf.mxu0
  %v535 = vadd.f32 %v438, %v534
  %v536 = vpop.f32.mrf.mxu0
  %537 = vmatprep.mubr.bf16.mxu0 0
  %538 = vmatmul.mubr.bf16.gmra.mxu0 %v179
  %v539 = vpop.f32.mrf.mxu0
  %v540 = vadd.f32 %v443, %v539
  %v541 = vpop.f32.mrf.mxu0
  %v542 = vpop.f32.mrf.mxu0
  %v543 = vadd.f32 %v446, %v542
  %v544 = vpop.f32.mrf.mxu0
  %545 = vmatprep.mubr.bf16.mxu0 0
  %546 = vmatmul.mubr.bf16.gmra.mxu0 %v180
  %v547 = vpop.f32.mrf.mxu0
  %v548 = vadd.f32 %v451, %v547
  %v549 = vpop.f32.mrf.mxu0
  %v550 = vpop.f32.mrf.mxu0
  %v551 = vadd.f32 %v454, %v550
  %v552 = vpop.f32.mrf.mxu0
  %553 = vmatprep.mubr.bf16.mxu0 0
  %554 = vmatmul.mubr.bf16.gmra.mxu0 %v181
  %v555 = vpop.f32.mrf.mxu0
  %v556 = vadd.f32 %v459, %v555
  %v557 = vpop.f32.mrf.mxu0
  %v558 = vpop.f32.mrf.mxu0
  %v559 = vadd.f32 %v462, %v558
  %v560 = vpop.f32.mrf.mxu0
  %561 = vmatprep.mubr.bf16.mxu0 0
  %562 = vmatmul.mubr.bf16.gmra.mxu0 %v182
  %v563 = vpop.f32.mrf.mxu0
  %v564 = vadd.f32 %v467, %v563
  %v565 = vpop.f32.mrf.mxu0
  %v566 = vpop.f32.mrf.mxu0
  %v567 = vadd.f32 %v470, %v566
  %v568 = vpop.f32.mrf.mxu0
  %569 = vmatprep.mubr.bf16.mxu0 0
  %570 = vmatmul.mubr.bf16.gmra.mxu0 %v183
  %v571 = vpop.f32.mrf.mxu0
  %v572 = vadd.f32 %v475, %v571
  %v573 = vpop.f32.mrf.mxu0
  %v574 = vpop.f32.mrf.mxu0
  %v575 = vadd.f32 %v478, %v574
  %v576 = vpop.f32.mrf.mxu0
  %577 = vmatprep.mubr.bf16.mxu0 0
  %578 = vmatmul.mubr.bf16.gmra.mxu0 %v184
  %v579 = vpop.f32.mrf.mxu0
  %v580 = vadd.f32 %v483, %v579
  %v581 = vpop.f32.mrf.mxu0
  %v582 = vpop.f32.mrf.mxu0
  %v583 = vadd.f32 %v486, %v582
  %v584 = vpop.f32.mrf.mxu0
  %585 = vdwg.mxu0
  %v586 = vld [vmem:[%s5] sm:$0xf]
  %v587 = vld [vmem:[%s5 + $0x4] sm:$0xf]
  %v588 = vld [vmem:[%s5 + $0x8] sm:$0xf]
  %v589 = vld [vmem:[%s5 + $0xc] sm:$0xf]
  %v590 = vld [vmem:[%s5 + $0x10] sm:$0xf]
  %v591 = vld [vmem:[%s5 + $0x14] sm:$0xf]
  %v592 = vld [vmem:[%s5 + $0x18] sm:$0xf]
  %v593 = vld [vmem:[%s5 + $0x1c] sm:$0xf]
  %v594 = vld [vmem:[%s5 + $0x20] sm:$0xf]
  %v595 = vld [vmem:[%s5 + $0x24] sm:$0xf]
  %v596 = vld [vmem:[%s5 + $0x28] sm:$0xf]
  %v597 = vld [vmem:[%s5 + $0x2c] sm:$0xf]
  %v598 = vld [vmem:[%s5 + $0x30] sm:$0xf]
  %v599 = vld [vmem:[%s5 + $0x34] sm:$0xf]
  %v600 = vld [vmem:[%s5 + $0x38] sm:$0xf]
  %v601 = vld [vmem:[%s5 + $0x3c] sm:$0xf]
  %v602 = vld [vmem:[%s6] sm:$0x1]
  %v603 = vld [vmem:[%s7] sm:$0xf]
  %v604 = vld [vmem:[%s7 + $0x4] sm:$0xf]
  %v605 = vld [vmem:[%s7 + $0x8] sm:$0xf]
  %v606 = vld [vmem:[%s7 + $0xc] sm:$0xf]
  %v607 = vld [vmem:[%s7 + $0x10] sm:$0xf]
  %v608 = vld [vmem:[%s7 + $0x14] sm:$0xf]
  %v609 = vld [vmem:[%s7 + $0x18] sm:$0xf]
  %v610 = vld [vmem:[%s7 + $0x1c] sm:$0xf]
  %v611 = vld [vmem:[%s7 + $0x20] sm:$0xf]
  %v612 = vld [vmem:[%s7 + $0x24] sm:$0xf]
  %v613 = vld [vmem:[%s7 + $0x28] sm:$0xf]
  %v614 = vld [vmem:[%s7 + $0x2c] sm:$0xf]
  %v615 = vld [vmem:[%s7 + $0x30] sm:$0xf]
  %v616 = vld [vmem:[%s7 + $0x34] sm:$0xf]
  %v617 = vld [vmem:[%s7 + $0x38] sm:$0xf]
  %v618 = vld [vmem:[%s7 + $0x3c] sm:$0xf]
  %v619 = vld [vmem:[%s8] sm:$0x1]
  %v620 = vld [vmem:[%s9] sm:$0x1]
  %v621 = vld [vmem:[%s10] sm:$0x1]
  %v622 = vmax.f32 %v524, 0.0
  %v623 = vmax.f32 %v527, 0.0
  %v624 = vmax.f32 %v532, 0.0
  %v625 = vmax.f32 %v535, 0.0
  %v626 = vmax.f32 %v540, 0.0
  %v627 = vmax.f32 %v543, 0.0
  %v628 = vmax.f32 %v548, 0.0
  %v629 = vmax.f32 %v551, 0.0
  %v630 = vmax.f32 %v556, 0.0
  %v631 = vmax.f32 %v559, 0.0
  %v632 = vmax.f32 %v564, 0.0
  %v633 = vmax.f32 %v567, 0.0
  %v634 = vmax.f32 %v572, 0.0
  %v635 = vmax.f32 %v575, 0.0
  %v636 = vmax.f32 %v580, 0.0
  %v637 = vmax.f32 %v583, 0.0
  %v638 = vpack.c.bf16 %v623, %v622
  %v639 = vpack.c.bf16 %v625, %v624
  %v640 = vpack.c.bf16 %v627, %v626
  %v641 = vpack.c.bf16 %v629, %v628
  %v642 = vpack.c.bf16 %v631, %v630
  %v643 = vpack.c.bf16 %v633, %v632
  %v644 = vpack.c.bf16 %v635, %v634
  %v645 = vpack.c.bf16 %v637, %v636
  %v647 = vlaneseq
  %v648 = vshrl.u32 %v647, 7
  %v649 = vsub.s32 0, %v648
  %v650 = vrot.slane %v602, %v649
  %v668 = vunpack.c.l.b16 %v586
  %v669 = vunpack.c.l.b16 %v587
  %v670 = vunpack.c.l.b16 %v588
  %v671 = vunpack.c.l.b16 %v589
  %v672 = vunpack.c.l.b16 %v590
  %v673 = vunpack.c.l.b16 %v591
  %v674 = vunpack.c.l.b16 %v592
  %v675 = vunpack.c.l.b16 %v593
  %v676 = vunpack.c.l.b16 %v594
  %v677 = vunpack.c.l.b16 %v595
  %v678 = vunpack.c.l.b16 %v596
  %v679 = vunpack.c.l.b16 %v597
  %v680 = vunpack.c.l.b16 %v598
  %v681 = vunpack.c.l.b16 %v599
  %v682 = vunpack.c.l.b16 %v600
  %v683 = vunpack.c.l.b16 %v601
  %v684 = vpack.c.b16 %v669, %v668
  %v685 = vpack.c.b16 %v671, %v670
  %v686 = vpack.c.b16 %v673, %v672
  %v687 = vpack.c.b16 %v675, %v674
  %v688 = vpack.c.b16 %v677, %v676
  %v689 = vpack.c.b16 %v679, %v678
  %v690 = vpack.c.b16 %v681, %v680
  %v691 = vpack.c.b16 %v683, %v682
  %700 = vmatprep.subr.bf16.mxu0 0
  %701 = vmatpush1.bf16.msra.mxu0 %v691
  %702 = vmatprep.subr.bf16.mxu0 0
  %703 = vmatpush1.bf16.msra.mxu0 %v690
  %704 = vmatprep.subr.bf16.mxu0 0
  %705 = vmatpush1.bf16.msra.mxu0 %v689
  %706 = vmatprep.subr.bf16.mxu0 0
  %707 = vmatpush1.bf16.msra.mxu0 %v688
  %708 = vmatprep.subr.bf16.mxu0 0
  %709 = vmatpush1.bf16.msra.mxu0 %v687
  %710 = vmatprep.subr.bf16.mxu0 0
  %711 = vmatpush1.bf16.msra.mxu0 %v686
  %712 = vmatprep.subr.bf16.mxu0 0
  %713 = vmatpush1.bf16.msra.mxu0 %v685
  %714 = vmatprep.subr.bf16.mxu0 0
  %715 = vmatpush1.bf16.msra.mxu0 %v684
  %716 = vmatprep.subr.bf16.mxu0 0
  %717 = vmatpush2.bf16.msra.mxu0 0
  %718 = vmatprep.subr.bf16.mxu0 0
  %719 = vmatpush2.bf16.msra.mxu0 0
  %720 = vmatprep.subr.bf16.mxu0 0
  %721 = vmatpush2.bf16.msra.mxu0 0
  %722 = vmatprep.subr.bf16.mxu0 0
  %723 = vmatpush2.bf16.msra.mxu0 0
  %724 = vmatprep.subr.bf16.mxu0 0
  %725 = vmatpush2.bf16.msra.mxu0 0
  %726 = vmatprep.subr.bf16.mxu0 0
  %727 = vmatpush2.bf16.msra.mxu0 0
  %728 = vmatprep.subr.bf16.mxu0 0
  %729 = vmatpush2.bf16.msra.mxu0 0
  %730 = vmatprep.subr.bf16.mxu0 0
  %731 = vmatpush2.bf16.msra.mxu0 0
  %732 = vmatprep.mubr.bf16.mxu0 0
  %733 = vmatmul.mubr.bf16.gmra.mxu0 %v638
  %v734 = vpop.f32.mrf.mxu0
  %v735 = vadd.f32 %v650, %v734
  %v736 = vpop.f32.mrf.mxu0
  %v737 = vpop.f32.mrf.mxu0
  %v738 = vadd.f32 %v650, %v737
  %v739 = vpop.f32.mrf.mxu0
  %740 = vmatprep.mubr.bf16.mxu0 0
  %741 = vmatmul.mubr.bf16.gmra.mxu0 %v639
  %v742 = vpop.f32.mrf.mxu0
  %v743 = vadd.f32 %v650, %v742
  %v744 = vpop.f32.mrf.mxu0
  %v745 = vpop.f32.mrf.mxu0
  %v746 = vadd.f32 %v650, %v745
  %v747 = vpop.f32.mrf.mxu0
  %748 = vmatprep.mubr.bf16.mxu0 0
  %749 = vmatmul.mubr.bf16.gmra.mxu0 %v640
  %v750 = vpop.f32.mrf.mxu0
  %v751 = vadd.f32 %v650, %v750
  %v752 = vpop.f32.mrf.mxu0
  %v753 = vpop.f32.mrf.mxu0
  %v754 = vadd.f32 %v650, %v753
  %v755 = vpop.f32.mrf.mxu0
  %756 = vmatprep.mubr.bf16.mxu0 0
  %757 = vmatmul.mubr.bf16.gmra.mxu0 %v641
  %v758 = vpop.f32.mrf.mxu0
  %v759 = vadd.f32 %v650, %v758
  %v760 = vpop.f32.mrf.mxu0
  %v761 = vpop.f32.mrf.mxu0
  %v762 = vadd.f32 %v650, %v761
  %v763 = vpop.f32.mrf.mxu0
  %764 = vmatprep.mubr.bf16.mxu0 0
  %765 = vmatmul.mubr.bf16.gmra.mxu0 %v642
  %v766 = vpop.f32.mrf.mxu0
  %v767 = vadd.f32 %v650, %v766
  %v768 = vpop.f32.mrf.mxu0
  %v769 = vpop.f32.mrf.mxu0
  %v770 = vadd.f32 %v650, %v769
  %v771 = vpop.f32.mrf.mxu0
  %772 = vmatprep.mubr.bf16.mxu0 0
  %773 = vmatmul.mubr.bf16.gmra.mxu0 %v643
  %v774 = vpop.f32.mrf.mxu0
  %v775 = vadd.f32 %v650, %v774
  %v776 = vpop.f32.mrf.mxu0
  %v777 = vpop.f32.mrf.mxu0
  %v778 = vadd.f32 %v650, %v777
  %v779 = vpop.f32.mrf.mxu0
  %780 = vmatprep.mubr.bf16.mxu0 0
  %781 = vmatmul.mubr.bf16.gmra.mxu0 %v644
  %v782 = vpop.f32.mrf.mxu0
  %v783 = vadd.f32 %v650, %v782
  %v784 = vpop.f32.mrf.mxu0
  %v785 = vpop.f32.mrf.mxu0
  %v786 = vadd.f32 %v650, %v785
  %v787 = vpop.f32.mrf.mxu0
  %788 = vmatprep.mubr.bf16.mxu0 0
  %789 = vmatmul.mubr.bf16.gmra.mxu0 %v645
  %v790 = vpop.f32.mrf.mxu0
  %v791 = vadd.f32 %v650, %v790
  %v792 = vpop.f32.mrf.mxu0
  %v793 = vpop.f32.mrf.mxu0
  %v794 = vadd.f32 %v650, %v793
  %v795 = vpop.f32.mrf.mxu0
  %796 = vdwg.mxu0
  %v797 = vmax.f32 %v735, 0.0
  %v798 = vmax.f32 %v738, 0.0
  %v799 = vmax.f32 %v743, 0.0
  %v800 = vmax.f32 %v746, 0.0
  %v801 = vmax.f32 %v751, 0.0
  %v802 = vmax.f32 %v754, 0.0
  %v803 = vmax.f32 %v759, 0.0
  %v804 = vmax.f32 %v762, 0.0
  %v805 = vmax.f32 %v767, 0.0
  %v806 = vmax.f32 %v770, 0.0
  %v807 = vmax.f32 %v775, 0.0
  %v808 = vmax.f32 %v778, 0.0
  %v809 = vmax.f32 %v783, 0.0
  %v810 = vmax.f32 %v786, 0.0
  %v811 = vmax.f32 %v791, 0.0
  %v812 = vmax.f32 %v794, 0.0
  %v813 = vpack.c.bf16 %v798, %v797
  %v814 = vpack.c.bf16 %v800, %v799
  %v815 = vpack.c.bf16 %v802, %v801
  %v816 = vpack.c.bf16 %v804, %v803
  %v817 = vpack.c.bf16 %v806, %v805
  %v818 = vpack.c.bf16 %v808, %v807
  %v819 = vpack.c.bf16 %v810, %v809
  %v820 = vpack.c.bf16 %v812, %v811
  %v822 = vlaneseq
  %v823 = vshrl.u32 %v822, 7
  %v824 = vsub.s32 0, %v823
  %v825 = vrot.slane %v619, %v824
  %v843 = vunpack.c.l.b16 %v603
  %v844 = vunpack.c.l.b16 %v604
  %v845 = vunpack.c.l.b16 %v605
  %v846 = vunpack.c.l.b16 %v606
  %v847 = vunpack.c.l.b16 %v607
  %v848 = vunpack.c.l.b16 %v608
  %v849 = vunpack.c.l.b16 %v609
  %v850 = vunpack.c.l.b16 %v610
  %v851 = vunpack.c.l.b16 %v611
  %v852 = vunpack.c.l.b16 %v612
  %v853 = vunpack.c.l.b16 %v613
  %v854 = vunpack.c.l.b16 %v614
  %v855 = vunpack.c.l.b16 %v615
  %v856 = vunpack.c.l.b16 %v616
  %v857 = vunpack.c.l.b16 %v617
  %v858 = vunpack.c.l.b16 %v618
  %v859 = vpack.c.b16 %v844, %v843
  %v860 = vpack.c.b16 %v846, %v845
  %v861 = vpack.c.b16 %v848, %v847
  %v862 = vpack.c.b16 %v850, %v849
  %v863 = vpack.c.b16 %v852, %v851
  %v864 = vpack.c.b16 %v854, %v853
  %v865 = vpack.c.b16 %v856, %v855
  %v866 = vpack.c.b16 %v858, %v857
  %875 = vmatprep.subr.bf16.mxu0 0
  %876 = vmatpush1.bf16.msra.mxu0 %v866
  %877 = vmatprep.subr.bf16.mxu0 0
  %878 = vmatpush1.bf16.msra.mxu0 %v865
  %879 = vmatprep.subr.bf16.mxu0 0
  %880 = vmatpush1.bf16.msra.mxu0 %v864
  %881 = vmatprep.subr.bf16.mxu0 0
  %882 = vmatpush1.bf16.msra.mxu0 %v863
  %883 = vmatprep.subr.bf16.mxu0 0
  %884 = vmatpush1.bf16.msra.mxu0 %v862
  %885 = vmatprep.subr.bf16.mxu0 0
  %886 = vmatpush1.bf16.msra.mxu0 %v861
  %887 = vmatprep.subr.bf16.mxu0 0
  %888 = vmatpush1.bf16.msra.mxu0 %v860
  %889 = vmatprep.subr.bf16.mxu0 0
  %890 = vmatpush1.bf16.msra.mxu0 %v859
  %891 = vmatprep.subr.bf16.mxu0 0
  %892 = vmatpush2.bf16.msra.mxu0 0
  %893 = vmatprep.subr.bf16.mxu0 0
  %894 = vmatpush2.bf16.msra.mxu0 0
  %895 = vmatprep.subr.bf16.mxu0 0
  %896 = vmatpush2.bf16.msra.mxu0 0
  %897 = vmatprep.subr.bf16.mxu0 0
  %898 = vmatpush2.bf16.msra.mxu0 0
  %899 = vmatprep.subr.bf16.mxu0 0
  %900 = vmatpush2.bf16.msra.mxu0 0
  %901 = vmatprep.subr.bf16.mxu0 0
  %902 = vmatpush2.bf16.msra.mxu0 0
  %903 = vmatprep.subr.bf16.mxu0 0
  %904 = vmatpush2.bf16.msra.mxu0 0
  %905 = vmatprep.subr.bf16.mxu0 0
  %906 = vmatpush2.bf16.msra.mxu0 0
  %907 = vmatprep.mubr.bf16.mxu0 0
  %908 = vmatmul.mubr.bf16.gmra.mxu0 %v813
  %v909 = vpop.f32.mrf.mxu0
  %v910 = vadd.f32 %v825, %v909
  %v911 = vpop.f32.mrf.mxu0
  %v912 = vpop.f32.mrf.mxu0
  %v913 = vadd.f32 %v825, %v912
  %v914 = vpop.f32.mrf.mxu0
  %915 = vmatprep.mubr.bf16.mxu0 0
  %916 = vmatmul.mubr.bf16.gmra.mxu0 %v814
  %v917 = vpop.f32.mrf.mxu0
  %v918 = vadd.f32 %v825, %v917
  %v919 = vpop.f32.mrf.mxu0
  %v920 = vpop.f32.mrf.mxu0
  %v921 = vadd.f32 %v825, %v920
  %v922 = vpop.f32.mrf.mxu0
  %923 = vmatprep.mubr.bf16.mxu0 0
  %924 = vmatmul.mubr.bf16.gmra.mxu0 %v815
  %v925 = vpop.f32.mrf.mxu0
  %v926 = vadd.f32 %v825, %v925
  %v927 = vpop.f32.mrf.mxu0
  %v928 = vpop.f32.mrf.mxu0
  %v929 = vadd.f32 %v825, %v928
  %v930 = vpop.f32.mrf.mxu0
  %931 = vmatprep.mubr.bf16.mxu0 0
  %932 = vmatmul.mubr.bf16.gmra.mxu0 %v816
  %v933 = vpop.f32.mrf.mxu0
  %v934 = vadd.f32 %v825, %v933
  %v935 = vpop.f32.mrf.mxu0
  %v936 = vpop.f32.mrf.mxu0
  %v937 = vadd.f32 %v825, %v936
  %v938 = vpop.f32.mrf.mxu0
  %939 = vmatprep.mubr.bf16.mxu0 0
  %940 = vmatmul.mubr.bf16.gmra.mxu0 %v817
  %v941 = vpop.f32.mrf.mxu0
  %v942 = vadd.f32 %v825, %v941
  %v943 = vpop.f32.mrf.mxu0
  %v944 = vpop.f32.mrf.mxu0
  %v945 = vadd.f32 %v825, %v944
  %v946 = vpop.f32.mrf.mxu0
  %947 = vmatprep.mubr.bf16.mxu0 0
  %948 = vmatmul.mubr.bf16.gmra.mxu0 %v818
  %v949 = vpop.f32.mrf.mxu0
  %v950 = vadd.f32 %v825, %v949
  %v951 = vpop.f32.mrf.mxu0
  %v952 = vpop.f32.mrf.mxu0
  %v953 = vadd.f32 %v825, %v952
  %v954 = vpop.f32.mrf.mxu0
  %955 = vmatprep.mubr.bf16.mxu0 0
  %956 = vmatmul.mubr.bf16.gmra.mxu0 %v819
  %v957 = vpop.f32.mrf.mxu0
  %v958 = vadd.f32 %v825, %v957
  %v959 = vpop.f32.mrf.mxu0
  %v960 = vpop.f32.mrf.mxu0
  %v961 = vadd.f32 %v825, %v960
  %v962 = vpop.f32.mrf.mxu0
  %963 = vmatprep.mubr.bf16.mxu0 0
  %964 = vmatmul.mubr.bf16.gmra.mxu0 %v820
  %v965 = vpop.f32.mrf.mxu0
  %v966 = vadd.f32 %v825, %v965
  %v967 = vpop.f32.mrf.mxu0
  %v968 = vpop.f32.mrf.mxu0
  %v969 = vadd.f32 %v825, %v968
  %v970 = vpop.f32.mrf.mxu0
  %971 = vdwg.mxu0
  %972 = vadd.xlane.f32.xlu0 %v910
  %v973 = vpop.xlane.xlu0 %972
  %974 = vadd.xlane.f32.xlu0 %v913
  %v975 = vpop.xlane.xlu0 %974
  %976 = vadd.xlane.f32.xlu0 %v918
  %v977 = vpop.xlane.xlu0 %976
  %978 = vadd.xlane.f32.xlu0 %v921
  %v979 = vpop.xlane.xlu0 %978
  %980 = vadd.xlane.f32.xlu0 %v926
  %v981 = vpop.xlane.xlu0 %980
  %982 = vadd.xlane.f32.xlu0 %v929
  %v983 = vpop.xlane.xlu0 %982
  %984 = vadd.xlane.f32.xlu0 %v934
  %v985 = vpop.xlane.xlu0 %984
  %986 = vadd.xlane.f32.xlu0 %v937
  %v987 = vpop.xlane.xlu0 %986
  %988 = vadd.xlane.f32.xlu0 %v942
  %v989 = vpop.xlane.xlu0 %988
  %990 = vadd.xlane.f32.xlu0 %v945
  %v991 = vpop.xlane.xlu0 %990
  %992 = vadd.xlane.f32.xlu0 %v950
  %v993 = vpop.xlane.xlu0 %992
  %994 = vadd.xlane.f32.xlu0 %v953
  %v995 = vpop.xlane.xlu0 %994
  %996 = vadd.xlane.f32.xlu0 %v958
  %v997 = vpop.xlane.xlu0 %996
  %998 = vadd.xlane.f32.xlu0 %v961
  %v999 = vpop.xlane.xlu0 %998
  %1000 = vadd.xlane.f32.xlu0 %v966
  %v1001 = vpop.xlane.xlu0 %1000
  %1002 = vadd.xlane.f32.xlu0 %v969
  %v1003 = vpop.xlane.xlu0 %1002
  %v1004 = vrcp.pop 128.0
  %v1005 = vmul.f32 %v973, %v1004
  %v1006 = vmul.f32 %v975, %v1004
  %v1007 = vmul.f32 %v977, %v1004
  %v1008 = vmul.f32 %v979, %v1004
  %v1009 = vmul.f32 %v981, %v1004
  %v1010 = vmul.f32 %v983, %v1004
  %v1011 = vmul.f32 %v985, %v1004
  %v1012 = vmul.f32 %v987, %v1004
  %v1013 = vmul.f32 %v989, %v1004
  %v1014 = vmul.f32 %v991, %v1004
  %v1015 = vmul.f32 %v993, %v1004
  %v1016 = vmul.f32 %v995, %v1004
  %v1017 = vmul.f32 %v997, %v1004
  %v1018 = vmul.f32 %v999, %v1004
  %v1019 = vmul.f32 %v1001, %v1004
  %v1020 = vmul.f32 %v1003, %v1004
  %v1021 = vsub.f32 %v910, %v1005
  %v1022 = vsub.f32 %v913, %v1006
  %v1023 = vsub.f32 %v918, %v1007
  %v1024 = vsub.f32 %v921, %v1008
  %v1025 = vsub.f32 %v926, %v1009
  %v1026 = vsub.f32 %v929, %v1010
  %v1027 = vsub.f32 %v934, %v1011
  %v1028 = vsub.f32 %v937, %v1012
  %v1029 = vsub.f32 %v942, %v1013
  %v1030 = vsub.f32 %v945, %v1014
  %v1031 = vsub.f32 %v950, %v1015
  %v1032 = vsub.f32 %v953, %v1016
  %v1033 = vsub.f32 %v958, %v1017
  %v1034 = vsub.f32 %v961, %v1018
  %v1035 = vsub.f32 %v966, %v1019
  %v1036 = vsub.f32 %v969, %v1020
  %v1037 = vmul.f32 %v1021, %v1021
  %v1038 = vmul.f32 %v1022, %v1022
  %v1039 = vmul.f32 %v1023, %v1023
  %v1040 = vmul.f32 %v1024, %v1024
  %v1041 = vmul.f32 %v1025, %v1025
  %v1042 = vmul.f32 %v1026, %v1026
  %v1043 = vmul.f32 %v1027, %v1027
  %v1044 = vmul.f32 %v1028, %v1028
  %v1045 = vmul.f32 %v1029, %v1029
  %v1046 = vmul.f32 %v1030, %v1030
  %v1047 = vmul.f32 %v1031, %v1031
  %v1048 = vmul.f32 %v1032, %v1032
  %v1049 = vmul.f32 %v1033, %v1033
  %v1050 = vmul.f32 %v1034, %v1034
  %v1051 = vmul.f32 %v1035, %v1035
  %v1052 = vmul.f32 %v1036, %v1036
  %1053 = vadd.xlane.f32.xlu0 %v1037
  %v1054 = vpop.xlane.xlu0 %1053
  %1055 = vadd.xlane.f32.xlu0 %v1038
  %v1056 = vpop.xlane.xlu0 %1055
  %1057 = vadd.xlane.f32.xlu0 %v1039
  %v1058 = vpop.xlane.xlu0 %1057
  %1059 = vadd.xlane.f32.xlu0 %v1040
  %v1060 = vpop.xlane.xlu0 %1059
  %1061 = vadd.xlane.f32.xlu0 %v1041
  %v1062 = vpop.xlane.xlu0 %1061
  %1063 = vadd.xlane.f32.xlu0 %v1042
  %v1064 = vpop.xlane.xlu0 %1063
  %1065 = vadd.xlane.f32.xlu0 %v1043
  %v1066 = vpop.xlane.xlu0 %1065
  %1067 = vadd.xlane.f32.xlu0 %v1044
  %v1068 = vpop.xlane.xlu0 %1067
  %1069 = vadd.xlane.f32.xlu0 %v1045
  %v1070 = vpop.xlane.xlu0 %1069
  %1071 = vadd.xlane.f32.xlu0 %v1046
  %v1072 = vpop.xlane.xlu0 %1071
  %1073 = vadd.xlane.f32.xlu0 %v1047
  %v1074 = vpop.xlane.xlu0 %1073
  %1075 = vadd.xlane.f32.xlu0 %v1048
  %v1076 = vpop.xlane.xlu0 %1075
  %1077 = vadd.xlane.f32.xlu0 %v1049
  %v1078 = vpop.xlane.xlu0 %1077
  %1079 = vadd.xlane.f32.xlu0 %v1050
  %v1080 = vpop.xlane.xlu0 %1079
  %1081 = vadd.xlane.f32.xlu0 %v1051
  %v1082 = vpop.xlane.xlu0 %1081
  %1083 = vadd.xlane.f32.xlu0 %v1052
  %v1084 = vpop.xlane.xlu0 %1083
  %v1085 = vmul.f32 %v1054, %v1004
  %v1086 = vmul.f32 %v1056, %v1004
  %v1087 = vmul.f32 %v1058, %v1004
  %v1088 = vmul.f32 %v1060, %v1004
  %v1089 = vmul.f32 %v1062, %v1004
  %v1090 = vmul.f32 %v1064, %v1004
  %v1091 = vmul.f32 %v1066, %v1004
  %v1092 = vmul.f32 %v1068, %v1004
  %v1093 = vmul.f32 %v1070, %v1004
  %v1094 = vmul.f32 %v1072, %v1004
  %v1095 = vmul.f32 %v1074, %v1004
  %v1096 = vmul.f32 %v1076, %v1004
  %v1097 = vmul.f32 %v1078, %v1004
  %v1098 = vmul.f32 %v1080, %v1004
  %v1099 = vmul.f32 %v1082, %v1004
  %v1100 = vmul.f32 %v1084, %v1004
  %v1101 = vadd.f32 %v1085, 1e-05
  %v1102 = vadd.f32 %v1086, 1e-05
  %v1103 = vadd.f32 %v1087, 1e-05
  %v1104 = vadd.f32 %v1088, 1e-05
  %v1105 = vadd.f32 %v1089, 1e-05
  %v1106 = vadd.f32 %v1090, 1e-05
  %v1107 = vadd.f32 %v1091, 1e-05
  %v1108 = vadd.f32 %v1092, 1e-05
  %v1109 = vadd.f32 %v1093, 1e-05
  %v1110 = vadd.f32 %v1094, 1e-05
  %v1111 = vadd.f32 %v1095, 1e-05
  %v1112 = vadd.f32 %v1096, 1e-05
  %v1113 = vadd.f32 %v1097, 1e-05
  %v1114 = vadd.f32 %v1098, 1e-05
  %v1115 = vadd.f32 %v1099, 1e-05
  %v1116 = vadd.f32 %v1100, 1e-05
  %v1117 = vrsqrt.pop %v1101
  %v1118 = vrsqrt.pop %v1102
  %v1119 = vrsqrt.pop %v1103
  %v1120 = vrsqrt.pop %v1104
  %v1121 = vrsqrt.pop %v1105
  %v1122 = vrsqrt.pop %v1106
  %v1123 = vrsqrt.pop %v1107
  %v1124 = vrsqrt.pop %v1108
  %v1125 = vrsqrt.pop %v1109
  %v1126 = vrsqrt.pop %v1110
  %v1127 = vrsqrt.pop %v1111
  %v1128 = vrsqrt.pop %v1112
  %v1129 = vrsqrt.pop %v1113
  %v1130 = vrsqrt.pop %v1114
  %v1131 = vrsqrt.pop %v1115
  %v1132 = vrsqrt.pop %v1116
  %v1133 = vmul.f32 %v1021, %v1117
  %v1134 = vmul.f32 %v1022, %v1118
  %v1135 = vmul.f32 %v1023, %v1119
  %v1136 = vmul.f32 %v1024, %v1120
  %v1137 = vmul.f32 %v1025, %v1121
  %v1138 = vmul.f32 %v1026, %v1122
  %v1139 = vmul.f32 %v1027, %v1123
  %v1140 = vmul.f32 %v1028, %v1124
  %v1141 = vmul.f32 %v1029, %v1125
  %v1142 = vmul.f32 %v1030, %v1126
  %v1143 = vmul.f32 %v1031, %v1127
  %v1144 = vmul.f32 %v1032, %v1128
  %v1145 = vmul.f32 %v1033, %v1129
  %v1146 = vmul.f32 %v1034, %v1130
  %v1147 = vmul.f32 %v1035, %v1131
  %v1148 = vmul.f32 %v1036, %v1132
  %v1150 = vlaneseq
  %v1151 = vshrl.u32 %v1150, 7
  %v1152 = vsub.s32 0, %v1151
  %v1153 = vrot.slane %v620, %v1152
  %v1155 = vmul.f32 %v1133, %v1153
  %v1156 = vmul.f32 %v1134, %v1153
  %v1157 = vmul.f32 %v1135, %v1153
  %v1158 = vmul.f32 %v1136, %v1153
  %v1159 = vmul.f32 %v1137, %v1153
  %v1160 = vmul.f32 %v1138, %v1153
  %v1161 = vmul.f32 %v1139, %v1153
  %v1162 = vmul.f32 %v1140, %v1153
  %v1163 = vmul.f32 %v1141, %v1153
  %v1164 = vmul.f32 %v1142, %v1153
  %v1165 = vmul.f32 %v1143, %v1153
  %v1166 = vmul.f32 %v1144, %v1153
  %v1167 = vmul.f32 %v1145, %v1153
  %v1168 = vmul.f32 %v1146, %v1153
  %v1169 = vmul.f32 %v1147, %v1153
  %v1170 = vmul.f32 %v1148, %v1153
  %v1172 = vlaneseq
  %v1173 = vshrl.u32 %v1172, 7
  %v1174 = vsub.s32 0, %v1173
  %v1175 = vrot.slane %v621, %v1174
  %v1177 = vadd.f32 %v1155, %v1175
  %v1178 = vadd.f32 %v1156, %v1175
  %v1179 = vadd.f32 %v1157, %v1175
  %v1180 = vadd.f32 %v1158, %v1175
  %v1181 = vadd.f32 %v1159, %v1175
  %v1182 = vadd.f32 %v1160, %v1175
  %v1183 = vadd.f32 %v1161, %v1175
  %v1184 = vadd.f32 %v1162, %v1175
  %v1185 = vadd.f32 %v1163, %v1175
  %v1186 = vadd.f32 %v1164, %v1175
  %v1187 = vadd.f32 %v1165, %v1175
  %v1188 = vadd.f32 %v1166, %v1175
  %v1189 = vadd.f32 %v1167, %v1175
  %v1190 = vadd.f32 %v1168, %v1175
  %v1191 = vadd.f32 %v1169, %v1175
  %v1192 = vadd.f32 %v1170, %v1175
  %v1193 = vpack.c.bf16 %v1178, %v1177
  %v1194 = vpack.c.bf16 %v1180, %v1179
  %v1195 = vpack.c.bf16 %v1182, %v1181
  %v1196 = vpack.c.bf16 %v1184, %v1183
  %v1197 = vpack.c.bf16 %v1186, %v1185
  %v1198 = vpack.c.bf16 %v1188, %v1187
  %v1199 = vpack.c.bf16 %v1190, %v1189
  %v1200 = vpack.c.bf16 %v1192, %v1191
  %v1209 = vunpack.c.l.b16 %v1193
  %v1210 = vunpack.c.h.b16 %v1193
  %v1211 = vunpack.c.l.b16 %v1194
  %v1212 = vunpack.c.h.b16 %v1194
  %v1213 = vunpack.c.l.b16 %v1195
  %v1214 = vunpack.c.h.b16 %v1195
  %v1215 = vunpack.c.l.b16 %v1196
  %v1216 = vunpack.c.h.b16 %v1196
  %v1217 = vunpack.c.l.b16 %v1197
  %v1218 = vunpack.c.h.b16 %v1197
  %v1219 = vunpack.c.l.b16 %v1198
  %v1220 = vunpack.c.h.b16 %v1198
  %v1221 = vunpack.c.l.b16 %v1199
  %v1222 = vunpack.c.h.b16 %v1199
  %v1223 = vunpack.c.l.b16 %v1200
  %v1224 = vunpack.c.h.b16 %v1200
  %v1225 = vpack.c.b16 %v1209, %v1209
  %v1226 = vpack.c.b16 %v1210, %v1210
  %v1227 = vpack.c.b16 %v1211, %v1211
  %v1228 = vpack.c.b16 %v1212, %v1212
  %v1229 = vpack.c.b16 %v1213, %v1213
  %v1230 = vpack.c.b16 %v1214, %v1214
  %v1231 = vpack.c.b16 %v1215, %v1215
  %v1232 = vpack.c.b16 %v1216, %v1216
  %v1233 = vpack.c.b16 %v1217, %v1217
  %v1234 = vpack.c.b16 %v1218, %v1218
  %v1235 = vpack.c.b16 %v1219, %v1219
  %v1236 = vpack.c.b16 %v1220, %v1220
  %v1237 = vpack.c.b16 %v1221, %v1221
  %v1238 = vpack.c.b16 %v1222, %v1222
  %v1239 = vpack.c.b16 %v1223, %v1223
  %v1240 = vpack.c.b16 %v1224, %v1224
  %1257 = vst [vmem:[%s11] sm:$0xf] %v1225
  %1258 = vst [vmem:[%s11 + $0x4] sm:$0xf] %v1226
  %1259 = vst [vmem:[%s11 + $0x8] sm:$0xf] %v1227
  %1260 = vst [vmem:[%s11 + $0xc] sm:$0xf] %v1228
  %1261 = vst [vmem:[%s11 + $0x10] sm:$0xf] %v1229
  %1262 = vst [vmem:[%s11 + $0x14] sm:$0xf] %v1230
  %1263 = vst [vmem:[%s11 + $0x18] sm:$0xf] %v1231
  %1264 = vst [vmem:[%s11 + $0x1c] sm:$0xf] %v1232
  %1265 = vst [vmem:[%s11 + $0x20] sm:$0xf] %v1233
  %1266 = vst [vmem:[%s11 + $0x24] sm:$0xf] %v1234
  %1267 = vst [vmem:[%s11 + $0x28] sm:$0xf] %v1235
  %1268 = vst [vmem:[%s11 + $0x2c] sm:$0xf] %v1236
  %1269 = vst [vmem:[%s11 + $0x30] sm:$0xf] %v1237
  %1270 = vst [vmem:[%s11 + $0x34] sm:$0xf] %v1238
  %1271 = vst [vmem:[%s11 + $0x38] sm:$0xf] %v1239
  %1272 = vst [vmem:[%s11 + $0x3c] sm:$0xf] %v1240
  %v1273 = vadd.f32 %v41, %v1177
  %v1274 = vadd.f32 %v42, %v1178
  %v1275 = vadd.f32 %v43, %v1179
  %v1276 = vadd.f32 %v44, %v1180
  %v1277 = vadd.f32 %v45, %v1181
  %v1278 = vadd.f32 %v46, %v1182
  %v1279 = vadd.f32 %v47, %v1183
  %v1280 = vadd.f32 %v48, %v1184
  %v1281 = vadd.f32 %v49, %v1185
  %v1282 = vadd.f32 %v50, %v1186
  %v1283 = vadd.f32 %v51, %v1187
  %v1284 = vadd.f32 %v52, %v1188
  %v1285 = vadd.f32 %v53, %v1189
  %v1286 = vadd.f32 %v54, %v1190
  %v1287 = vadd.f32 %v55, %v1191
  %v1288 = vadd.f32 %v56, %v1192
  %1289 = vst [vmem:[%s12] sm:$0xff] %v1273
  %1290 = vst [vmem:[%s12 + $0x8] sm:$0xff] %v1274
  %1291 = vst [vmem:[%s12 + $0x10] sm:$0xff] %v1275
  %1292 = vst [vmem:[%s12 + $0x18] sm:$0xff] %v1276
  %1293 = vst [vmem:[%s12 + $0x20] sm:$0xff] %v1277
  %1294 = vst [vmem:[%s12 + $0x28] sm:$0xff] %v1278
  %1295 = vst [vmem:[%s12 + $0x30] sm:$0xff] %v1279
  %1296 = vst [vmem:[%s12 + $0x38] sm:$0xff] %v1280
  %1297 = vst [vmem:[%s12 + $0x40] sm:$0xff] %v1281
  %1298 = vst [vmem:[%s12 + $0x48] sm:$0xff] %v1282
  %1299 = vst [vmem:[%s12 + $0x50] sm:$0xff] %v1283
  %1300 = vst [vmem:[%s12 + $0x58] sm:$0xff] %v1284
  %1301 = vst [vmem:[%s12 + $0x60] sm:$0xff] %v1285
  %1302 = vst [vmem:[%s12 + $0x68] sm:$0xff] %v1286
  %1303 = vst [vmem:[%s12 + $0x70] sm:$0xff] %v1287
  %1304 = vst [vmem:[%s12 + $0x78] sm:$0xff] %v1288
  // Predicated region
  $region46: #{processor_forward.4} parent=0 // pred_check
    _
  $region47: #{processor_forward.4} parent=0 // pred_check_branch
    %1306 = sbr.rel (0) target = $region49
  $region48: #{processor_forward.4} parent=0 // pred_region
    _
  $region49: #{processor_forward.4} parent=0 // pred_fallthru
    _
  // Predicated region
  $region50: #{processor_forward.4} parent=0 // pred_check
    _
  $region51: #{processor_forward.4} parent=0 // pred_check_branch
    %1308 = sbr.rel (0) target = $region53
  $region52: #{processor_forward.4} parent=0 // pred_region
    _
  $region53: #{processor_forward.4} parent=0 // pred_fallthru
    _
  // Predicated region
  $region54: #{processor_forward.4} parent=0 // pred_check
    _
  $region55: #{processor_forward.4} parent=0 // pred_check_branch
    %1310 = sbr.rel (0) target = $region57
  $region56: #{processor_forward.4} parent=0 // pred_region
    _
  $region57: #{processor_forward.4} parent=0 // pred_fallthru
    _
  // Predicated region
  $region58: #{processor_forward.4} parent=0 // pred_check
    _
  $region59: #{processor_forward.4} parent=0 // pred_check_branch
    %1312 = sbr.rel (0) target = $region61
  $region60: #{processor_forward.4} parent=0 // pred_region
    _
  $region61: #{processor_forward.4} parent=0 // pred_fallthru
    _

</llo_original>
